<compile_context>
chip_gen: v5e
topology: v5e:2x2
jax: 0.10.0
libtpu: 0.0.40
codegen_flags: <defaults>
</compile_context>

<pallas_src>
import math
import jax
import jax.numpy as jnp
from jax import lax
from jax.experimental import pallas as pl
from jax.experimental.pallas import tpu as pltpu

NEG_INF = -1e30


def _candidate_pool_kernel(sep_ref, emb_ref, pooled_ref):
    """Batched two-stage attention pooling over TB documents.

    sep_ref:    [TB, 1, 3] int32  (positions of the three 102 separator tokens)
    emb_ref:    [TB, L, D]        encoder token embeddings (native dtype)
    pooled_ref: [TB, 1, D]        attention-pooled fact embedding per document
    """
    emb = emb_ref[...]                    # native dtype; products promote to f32
    sep = sep_ref[...]                    # [TB, 1, 3]
    TB, L, D = emb.shape

    sep0 = sep[:, :, 0:1]                 # [TB, 1, 1]
    sep1 = sep[:, :, 1:2]
    sep2 = sep[:, :, 2:3]

    pos = lax.broadcasted_iota(jnp.int32, (TB, L, 1), 1)   # token positions

    fact_mask = pos < sep0                                 # tokens 0 .. sep0-1
    reason_mask = (pos > sep0) & (pos < sep1)              # sep0+1 .. sep1-1
    judg_mask = (pos > sep1) & (pos < sep2)                # sep1+1 .. sep2-1

    # judgment embedding = mean over judgment segment -> [TB, 1, D]
    jm = judg_mask.astype(jnp.float32)
    judg_cnt = jnp.maximum(jnp.sum(jm, axis=1, keepdims=True), 1.0)   # [TB,1,1]
    judgment = jnp.sum(emb * jm, axis=1, keepdims=True) / judg_cnt    # [TB,1,D]

    reason_num = jnp.maximum(sep1 - sep0 - 1, 1).astype(jnp.float32)  # [TB,1,1]
    fact_num = jnp.maximum(sep0, 1).astype(jnp.float32)               # [TB,1,1]

    # r_j = reason . judgment / sqrt(R); softmax over reason tokens.
    # VPU broadcast-multiply + lane reduce (no width-1 MXU matvec / transposes).
    rj = jnp.sum(emb * judgment, axis=2, keepdims=True) * lax.rsqrt(reason_num)
    rj = jnp.where(reason_mask, rj, NEG_INF)          # mask BEFORE max
    rj = rj - jnp.max(rj, axis=1, keepdims=True)
    rj_e = jnp.exp(rj)
    rj_w = rj_e * pl.reciprocal(jnp.sum(rj_e, axis=1, keepdims=True))  # [TB,L,1]
    w_r_j = jnp.sum(rj_w * emb, axis=1, keepdims=True)                 # [TB,1,D]

    # t_j = fact . w_r_j / sqrt(F); softmax over fact tokens.
    tj = jnp.sum(emb * w_r_j, axis=2, keepdims=True) * lax.rsqrt(fact_num)
    tj = jnp.where(fact_mask, tj, NEG_INF)
    tj = tj - jnp.max(tj, axis=1, keepdims=True)
    tj_e = jnp.exp(tj)
    tj_w = tj_e * pl.reciprocal(jnp.sum(tj_e, axis=1, keepdims=True))  # [TB,L,1]
    pooled = jnp.sum(tj_w * emb, axis=1, keepdims=True)                # [TB,1,D]

    pooled_ref[...] = pooled.astype(pooled_ref.dtype)


def cross_case_candidate_pool(embeddings, sep_idx, *, tb=None, vmem_limit_bytes=None):
    """embeddings: [B, L, D] (f32 or bf16); sep_idx: [B, 3] int32 (102-token positions).

    Returns (pooled [B, D], raw_cls [B, D]) matching the PyTorch candidate branch.
    """
    B, L, D = embeddings.shape
    itemsize = jnp.dtype(embeddings.dtype).itemsize

    # Generation-aware VMEM budget: 3/4 of physical capped at 96 MiB
    # (v5e/v6e: 128 MiB physical -> 96 MiB; v7x: 64 MiB -> 48 MiB; fallback 48 MiB).
    if vmem_limit_bytes is None:
        try:
            phys = int(pltpu.get_tpu_info().vmem_capacity_bytes)
        except Exception:
            phys = 64 << 20
        vmem_limit_bytes = max(32 << 20, min(phys * 3 // 4, 96 << 20))

    if tb is None:
        # Per-doc footprint: double-buffered input tile + ~4 live f32 elementwise
        # temporaries of the same (L, D) footprint inside the kernel.
        per_doc = 2 * L * D * itemsize + 4 * L * D * 4
        max_tb = max(1, (vmem_limit_bytes * 3 // 5) // per_doc)
        max_tb = min(max_tb, 1024)
        tb = B if max_tb >= B else max(8, (max_tb // 8) * 8)

    # Pad the batch so tb divides it (padded docs get safe dummy seps; results dropped).
    Bp = ((B + tb - 1) // tb) * tb
    sep_idx = sep_idx.astype(jnp.int32)
    if Bp != B:
        pad = Bp - B
        embeddings_p = jnp.concatenate(
            [embeddings, jnp.zeros((pad, L, D), embeddings.dtype)], axis=0)
        dummy = jnp.broadcast_to(jnp.array([[1, 3, 5]], jnp.int32), (pad, 3))
        sep_p = jnp.concatenate([sep_idx, dummy], axis=0)
    else:
        embeddings_p, sep_p = embeddings, sep_idx
    sep3 = sep_p[:, None, :]          # [Bp, 1, 3] — leading batch dim matches emb tile

    grid_spec = pltpu.PrefetchScalarGridSpec(
        num_scalar_prefetch=0,
        grid=(Bp // tb,),
        in_specs=[
            pl.BlockSpec((tb, 1, 3), lambda b: (b, 0, 0)),
            pl.BlockSpec((tb, L, D), lambda b: (b, 0, 0)),
        ],
        out_specs=pl.BlockSpec((tb, 1, D), lambda b: (b, 0, 0)),
    )
    pooled = pl.pallas_call(
        _candidate_pool_kernel,
        grid_spec=grid_spec,
        out_shape=jax.ShapeDtypeStruct((Bp, 1, D), embeddings.dtype),
        compiler_params=pltpu.CompilerParams(
            dimension_semantics=("parallel",),          # independent batch blocks -> both TCs on v7x
            vmem_limit_bytes=int(vmem_limit_bytes)),
    )(sep3, embeddings_p)

    pooled = pooled.reshape(Bp, D)[:B]   # contiguous -> free reshape/slice in XLA
    raw = embeddings[:, 0, :]            # CLS row: plain XLA slice, no extra kernel DMA stream
    return pooled, raw


def reference_candidate_pool(embeddings, sep_idx):
    """Pure-JAX transcription of the PyTorch candidate branch (per-doc loop)."""
    outs, raws = [], []
    sep_host = jax.device_get(sep_idx)
    for b in range(embeddings.shape[0]):
        e = embeddings[b]
        s0, s1, s2 = (int(sep_host[b, 0]), int(sep_host[b, 1]), int(sep_host[b, 2]))
        fact = e[0:s0]                                   # [F, D]
        reason = e[s0 + 1:s1]                            # [R, D]
        judg = jnp.mean(e[s1 + 1:s2], axis=0, keepdims=True)          # [1, D]
        rj = (reason @ judg.T) * (1.0 / math.sqrt(reason.shape[0]))    # [R, 1]
        w = jax.nn.softmax(rj[:, 0][None, :], axis=1)                  # [1, R]
        w_r_j = (w @ reason).T                                         # [D, 1]
        tj = (fact @ w_r_j) * (1.0 / math.sqrt(fact.shape[0]))         # [F, 1]
        w2 = jax.nn.softmax(tj[:, 0][None, :], axis=1)                 # [1, F]
        pooled = w2 @ fact                                             # [1, D]
        outs.append(pooled)
        raws.append(e[0:1])
    return jnp.concatenate(outs, 0), jnp.concatenate(raws, 0)


if __name__ == "__main__":
    B, L, D = 4, 32, 128
    key = jax.random.PRNGKey(0)
    k_emb, k_w, k_b, k_w1, k_b1 = jax.random.split(key, 5)

    # Deterministic init of the module's parameters (unused in forward(), kept
    # for fidelity with the PyTorch module).
    weights = jax.random.normal(k_w, (D, D), jnp.float32).astype(jnp.bfloat16)
    bias = jax.random.normal(k_b, (D,), jnp.float32).astype(jnp.bfloat16)
    weights1 = jax.random.normal(k_w1, (D, D), jnp.float32).astype(jnp.bfloat16)
    bias1 = jax.random.normal(k_b1, (D,), jnp.float32).astype(jnp.bfloat16)
    del weights, bias, weights1, bias1

    # Encoder output embeddings (stand-in for the BERT encoder) and sep positions.
    embeddings = jax.random.normal(k_emb, (B, L, D), jnp.float32)
    sep_idx = jnp.array([[6, 14, 24], [8, 18, 30], [5, 12, 20], [10, 22, 31]],
                        dtype=jnp.int32)

    pooled, raw = cross_case_candidate_pool(embeddings, sep_idx)
    jax.block_until_ready((pooled, raw))

    ref_pooled, ref_raw = reference_candidate_pool(embeddings, sep_idx)
    assert pooled.shape == (B, D) and raw.shape == (B, D)
    assert jnp.allclose(pooled, ref_pooled, rtol=1e-4, atol=1e-4), "pooled mismatch"
    assert jnp.allclose(raw, ref_raw, rtol=1e-5, atol=1e-5), "raw mismatch"
    print("KERNEL_OK")
</pallas_src>

<mosaic_0001>
module attributes {stable_mosaic.version = 11 : i64} {
  func.func @_candidate_pool_kernel(%arg0: i32, %arg1: memref<4x1x3xi32, #tpu.memory_space<vmem>>, %arg2: memref<4x32x128xf32, #tpu.memory_space<vmem>>, %arg3: memref<4x1x128xf32, #tpu.memory_space<vmem>>) attributes {dimension_semantics = [#tpu.dimension_semantics<parallel>], iteration_bounds = array<i64: 1>, scalar_prefetch = 0 : i64, scratch_operands = 0 : i64, tpu.core_type = #tpu.core_type<tc>, window_params = [{transform_indices = @transform_0, window_bounds = array<i64: 4, 1, 3>}, {transform_indices = @transform_1, window_bounds = array<i64: 4, 32, 128>}, {transform_indices = @transform_2, window_bounds = array<i64: 4, 1, 128>}]} {
    %c0 = arith.constant 0 : index
    %c0_0 = arith.constant 0 : index
    %c0_1 = arith.constant 0 : index
    %0 = vector.load %arg2[%c0, %c0_0, %c0_1] : memref<4x32x128xf32, #tpu.memory_space<vmem>>, vector<4x32x128xf32>
    %c0_2 = arith.constant 0 : index
    %c0_3 = arith.constant 0 : index
    %c0_4 = arith.constant 0 : index
    %1 = vector.load %arg1[%c0_2, %c0_3, %c0_4] : memref<4x1x3xi32, #tpu.memory_space<vmem>>, vector<4x1x3xi32>
    %2 = vector.extract_strided_slice %1 {offsets = [0, 0, 0], sizes = [4, 1, 1], strides = [1, 1, 1]} : vector<4x1x3xi32> to vector<4x1x1xi32>
    %3 = vector.extract_strided_slice %1 {offsets = [0, 0, 1], sizes = [4, 1, 1], strides = [1, 1, 1]} : vector<4x1x3xi32> to vector<4x1x1xi32>
    %4 = vector.extract_strided_slice %1 {offsets = [0, 0, 2], sizes = [4, 1, 1], strides = [1, 1, 1]} : vector<4x1x3xi32> to vector<4x1x1xi32>
    %5 = tpu.iota {dimensions = array<i32: 1>} : vector<4x32x1xi32>
    %6 = vector.broadcast %2 : vector<4x1x1xi32> to vector<4x32x1xi32>
    %7 = arith.cmpi slt, %5, %6 : vector<4x32x1xi32>
    %8 = vector.broadcast %2 : vector<4x1x1xi32> to vector<4x32x1xi32>
    %9 = arith.cmpi sgt, %5, %8 : vector<4x32x1xi32>
    %10 = vector.broadcast %3 : vector<4x1x1xi32> to vector<4x32x1xi32>
    %11 = arith.cmpi slt, %5, %10 : vector<4x32x1xi32>
    %12 = arith.andi %9, %11 : vector<4x32x1xi1>
    %13 = vector.broadcast %3 : vector<4x1x1xi32> to vector<4x32x1xi32>
    %14 = arith.cmpi sgt, %5, %13 : vector<4x32x1xi32>
    %15 = vector.broadcast %4 : vector<4x1x1xi32> to vector<4x32x1xi32>
    %16 = arith.cmpi slt, %5, %15 : vector<4x32x1xi32>
    %17 = arith.andi %14, %16 : vector<4x32x1xi1>
    %18 = arith.extui %17 : vector<4x32x1xi1> to vector<4x32x1xi32>
    %19 = arith.sitofp %18 : vector<4x32x1xi32> to vector<4x32x1xf32>
    %cst = arith.constant dense<0.000000e+00> : vector<4x1xf32>
    %20 = vector.multi_reduction <add>, %19, %cst [1] : vector<4x32x1xf32> to vector<4x1xf32>
    %21 = vector.shape_cast %20 : vector<4x1xf32> to vector<4x1x1xf32>
    %cst_5 = arith.constant 1.000000e+00 : f32
    %22 = vector.broadcast %cst_5 : f32 to vector<4x1x1xf32>
    %23 = arith.maximumf %21, %22 : vector<4x1x1xf32>
    %24 = vector.broadcast %19 : vector<4x32x1xf32> to vector<4x32x128xf32>
    %25 = arith.mulf %0, %24 : vector<4x32x128xf32>
    %cst_6 = arith.constant dense<0.000000e+00> : vector<4x128xf32>
    %26 = vector.multi_reduction <add>, %25, %cst_6 [1] : vector<4x32x128xf32> to vector<4x128xf32>
    %27 = vector.shape_cast %26 : vector<4x128xf32> to vector<4x1x128xf32>
    %28 = vector.broadcast %23 : vector<4x1x1xf32> to vector<4x1x128xf32>
    %29 = arith.divf %27, %28 : vector<4x1x128xf32>
    %30 = arith.subi %3, %2 : vector<4x1x1xi32>
    %c1_i32 = arith.constant 1 : i32
    %31 = vector.broadcast %c1_i32 : i32 to vector<4x1x1xi32>
    %32 = arith.subi %30, %31 : vector<4x1x1xi32>
    %c1_i32_7 = arith.constant 1 : i32
    %33 = vector.broadcast %c1_i32_7 : i32 to vector<4x1x1xi32>
    %34 = arith.maxsi %32, %33 : vector<4x1x1xi32>
    %35 = arith.sitofp %34 : vector<4x1x1xi32> to vector<4x1x1xf32>
    %c1_i32_8 = arith.constant 1 : i32
    %36 = vector.broadcast %c1_i32_8 : i32 to vector<4x1x1xi32>
    %37 = arith.maxsi %2, %36 : vector<4x1x1xi32>
    %38 = arith.sitofp %37 : vector<4x1x1xi32> to vector<4x1x1xf32>
    %39 = vector.broadcast %29 : vector<4x1x128xf32> to vector<4x32x128xf32>
    %40 = arith.mulf %0, %39 : vector<4x32x128xf32>
    %cst_9 = arith.constant dense<0.000000e+00> : vector<4x32xf32>
    %41 = vector.multi_reduction <add>, %40, %cst_9 [2] : vector<4x32x128xf32> to vector<4x32xf32>
    %42 = vector.shape_cast %41 : vector<4x32xf32> to vector<4x32x1xf32>
    %43 = math.rsqrt %35 : vector<4x1x1xf32>
    %44 = vector.broadcast %43 : vector<4x1x1xf32> to vector<4x32x1xf32>
    %45 = arith.mulf %42, %44 : vector<4x32x1xf32>
    %cst_10 = arith.constant -1.000000e+30 : f32
    %46 = vector.broadcast %cst_10 : f32 to vector<4x32x1xf32>
    %47 = arith.select %12, %45, %46 : vector<4x32x1xi1>, vector<4x32x1xf32>
    %cst_11 = arith.constant dense<0xFF800000> : vector<4x1xf32>
    %48 = vector.multi_reduction <maximumf>, %47, %cst_11 [1] : vector<4x32x1xf32> to vector<4x1xf32>
    %49 = vector.shape_cast %48 : vector<4x1xf32> to vector<4x1x1xf32>
    %50 = vector.broadcast %49 : vector<4x1x1xf32> to vector<4x32x1xf32>
    %51 = arith.subf %47, %50 : vector<4x32x1xf32>
    %52 = math.exp %51 : vector<4x32x1xf32>
    %cst_12 = arith.constant dense<0.000000e+00> : vector<4x1xf32>
    %53 = vector.multi_reduction <add>, %52, %cst_12 [1] : vector<4x32x1xf32> to vector<4x1xf32>
    %54 = vector.shape_cast %53 : vector<4x1xf32> to vector<4x1x1xf32>
    %55 = tpu.reciprocal %54 : vector<4x1x1xf32> -> vector<4x1x1xf32>
    %56 = vector.broadcast %55 : vector<4x1x1xf32> to vector<4x32x1xf32>
    %57 = arith.mulf %52, %56 : vector<4x32x1xf32>
    %58 = vector.broadcast %57 : vector<4x32x1xf32> to vector<4x32x128xf32>
    %59 = arith.mulf %58, %0 : vector<4x32x128xf32>
    %cst_13 = arith.constant dense<0.000000e+00> : vector<4x128xf32>
    %60 = vector.multi_reduction <add>, %59, %cst_13 [1] : vector<4x32x128xf32> to vector<4x128xf32>
    %61 = vector.shape_cast %60 : vector<4x128xf32> to vector<4x1x128xf32>
    %62 = vector.broadcast %61 : vector<4x1x128xf32> to vector<4x32x128xf32>
    %63 = arith.mulf %0, %62 : vector<4x32x128xf32>
    %cst_14 = arith.constant dense<0.000000e+00> : vector<4x32xf32>
    %64 = vector.multi_reduction <add>, %63, %cst_14 [2] : vector<4x32x128xf32> to vector<4x32xf32>
    %65 = vector.shape_cast %64 : vector<4x32xf32> to vector<4x32x1xf32>
    %66 = math.rsqrt %38 : vector<4x1x1xf32>
    %67 = vector.broadcast %66 : vector<4x1x1xf32> to vector<4x32x1xf32>
    %68 = arith.mulf %65, %67 : vector<4x32x1xf32>
    %cst_15 = arith.constant -1.000000e+30 : f32
    %69 = vector.broadcast %cst_15 : f32 to vector<4x32x1xf32>
    %70 = arith.select %7, %68, %69 : vector<4x32x1xi1>, vector<4x32x1xf32>
    %cst_16 = arith.constant dense<0xFF800000> : vector<4x1xf32>
    %71 = vector.multi_reduction <maximumf>, %70, %cst_16 [1] : vector<4x32x1xf32> to vector<4x1xf32>
    %72 = vector.shape_cast %71 : vector<4x1xf32> to vector<4x1x1xf32>
    %73 = vector.broadcast %72 : vector<4x1x1xf32> to vector<4x32x1xf32>
    %74 = arith.subf %70, %73 : vector<4x32x1xf32>
    %75 = math.exp %74 : vector<4x32x1xf32>
    %cst_17 = arith.constant dense<0.000000e+00> : vector<4x1xf32>
    %76 = vector.multi_reduction <add>, %75, %cst_17 [1] : vector<4x32x1xf32> to vector<4x1xf32>
    %77 = vector.shape_cast %76 : vector<4x1xf32> to vector<4x1x1xf32>
    %78 = tpu.reciprocal %77 : vector<4x1x1xf32> -> vector<4x1x1xf32>
    %79 = vector.broadcast %78 : vector<4x1x1xf32> to vector<4x32x1xf32>
    %80 = arith.mulf %75, %79 : vector<4x32x1xf32>
    %81 = vector.broadcast %80 : vector<4x32x1xf32> to vector<4x32x128xf32>
    %82 = arith.mulf %81, %0 : vector<4x32x128xf32>
    %cst_18 = arith.constant dense<0.000000e+00> : vector<4x128xf32>
    %83 = vector.multi_reduction <add>, %82, %cst_18 [1] : vector<4x32x128xf32> to vector<4x128xf32>
    %84 = vector.shape_cast %83 : vector<4x128xf32> to vector<4x1x128xf32>
    %c0_19 = arith.constant 0 : index
    %c0_20 = arith.constant 0 : index
    %c0_21 = arith.constant 0 : index
    %85 = vector.load %arg3[%c0_19, %c0_20, %c0_21] : memref<4x1x128xf32, #tpu.memory_space<vmem>>, vector<4x1x128xf32>
    tpu.vector_store %arg3[%c0_19, %c0_20, %c0_21], %84 {strides = array<i32>} : memref<4x1x128xf32, #tpu.memory_space<vmem>>, vector<4x1x128xf32>,
    return
  }
  func.func @transform_0(%arg0: i32) -> (i32, i32, i32) {
    %c0_i32 = arith.constant 0 : i32
    %c0_i32_0 = arith.constant 0 : i32
    %c0_i32_1 = arith.constant 0 : i32
    return %arg0, %c0_i32, %c0_i32_0 : i32, i32, i32
  }
  func.func @transform_1(%arg0: i32) -> (i32, i32, i32) {
    %c0_i32 = arith.constant 0 : i32
    %c0_i32_0 = arith.constant 0 : i32
    %c0_i32_1 = arith.constant 0 : i32
    return %arg0, %c0_i32, %c0_i32_0 : i32, i32, i32
  }
  func.func @transform_2(%arg0: i32) -> (i32, i32, i32) {
    %c0_i32 = arith.constant 0 : i32
    %c0_i32_0 = arith.constant 0 : i32
    %c0_i32_1 = arith.constant 0 : i32
    return %arg0, %c0_i32, %c0_i32_0 : i32, i32, i32
  }
}

</mosaic_0001>

<llo_original>
// kernel: tpu_custom_call.1
$region0: #{tpu_custom_call.1}
  #allocation0 [shape = 'u32[]', space=smem, size = 0x4, offset = 0x4, fixed_abs, tag = 'smem constant byte address 0x4 - core index']
  #allocation1 [shape = 'u32[72,128]{1,0:T(1,128)}', space=vmem, size = 0x9000, scoped, tag = 'internal scratch']
  %s0 = inlined_call_operand.vmem [shape: s32[4,1,3], index: 0, kind: input, shape index: {}]
  %s1 = inlined_call_operand.hbm [shape: f32[4,32,128], index: 1, kind: input, shape index: {}]
  %s2 = inlined_call_operand.hbm [shape: f32[4,1,128], index: 2, kind: output, shape index: {}]
  %s3 = sld [smem:[#allocation0]]
  $region22: #{tpu_custom_call.1} parent=0
    _
  %s5 = ssub.s32 1, %s3
  %s6 = scalar_select 0, %s5, %s3
  $region1: #{tpu_custom_call.1} parent=0
    #allocation2 [shape = 'u8[65536]{0}', space=vmem, size = 0x10000, scoped, tag = 'input window, operand 1, single buffered']
    #allocation3 [shape = 's32[1]{0}', space=sflag, size = 0x4, scoped, tag = 'scoped memory for tpu_custom_call.1']
    #allocation4 [shape = 's32[1]{0}', space=sflag, size = 0x4, scoped, tag = 'scoped memory for tpu_custom_call.1']
    #allocation5 [shape = 'u8[2048]{0}', space=vmem, size = 0x800, scoped, tag = 'output window, operand 0, single buffered']
    %7 = vsyncpa [#allocation3], 0
    %8 = vsyncpa [#allocation4], 0
    // Predicated region
    $region2: #{tpu_custom_call.1} parent=1 // pred_check
      _
    $region3: #{tpu_custom_call.1} parent=1 // pred_check_branch
      %10 = sbr.rel (0) target = $region5
    $region4: #{tpu_custom_call.1} parent=1 // pred_region
      _
    $region5: #{tpu_custom_call.1} parent=1 // pred_fallthru
      _
    // Predicated region
    $region6: #{tpu_custom_call.1} parent=1 // pred_check
      _
    $region7: #{tpu_custom_call.1} parent=1 // pred_check_branch
      %12 = sbr.rel (0) target = $region9
    $region8: #{tpu_custom_call.1} parent=1 // pred_region
      %14 = vsyncadd [#allocation3], 0
      %s15 = sshll.u32 %s1, 4
      %s16 = int_to_ptr.hbm [resolvable:$true] %s15
      %s17 = sshll.u32 [#allocation2], 4
      %s18 = int_to_ptr.vmem [resolvable:$true] %s17
      %23 = dma.hbm_to_vmem [thread:$0]  %s16, 2048, %s18, [#allocation3], 128, 128, 8
    $region9: #{tpu_custom_call.1} parent=1 // pred_fallthru
      _
    // Predicated region
    $region10: #{tpu_custom_call.1} parent=1 // pred_check
      _
    $region11: #{tpu_custom_call.1} parent=1 // pred_check_branch
      %25 = sbr.rel (0) target = $region13
    $region12: #{tpu_custom_call.1} parent=1 // pred_region
      %27 = dma.done [#allocation3], 2048
    $region13: #{tpu_custom_call.1} parent=1 // pred_fallthru
      _
    %v28 = vld [vmem:[#allocation2] sm:$0xff]
    %v29 = vld [vmem:[#allocation2 + $0x8] sm:$0xff]
    %v30 = vld [vmem:[#allocation2 + $0x10] sm:$0xff]
    %v31 = vld [vmem:[#allocation2 + $0x18] sm:$0xff]
    %v32 = vld [vmem:[#allocation2 + $0x20] sm:$0xff]
    %v33 = vld [vmem:[#allocation2 + $0x28] sm:$0xff]
    %v34 = vld [vmem:[#allocation2 + $0x30] sm:$0xff]
    %v35 = vld [vmem:[#allocation2 + $0x38] sm:$0xff]
    %v36 = vld [vmem:[#allocation2 + $0x40] sm:$0xff]
    %v37 = vld [vmem:[#allocation2 + $0x48] sm:$0xff]
    %v38 = vld [vmem:[#allocation2 + $0x50] sm:$0xff]
    %v39 = vld [vmem:[#allocation2 + $0x58] sm:$0xff]
    %v40 = vld [vmem:[#allocation2 + $0x60] sm:$0xff]
    %v41 = vld [vmem:[#allocation2 + $0x68] sm:$0xff]
    %v42 = vld [vmem:[#allocation2 + $0x70] sm:$0xff]
    %v43 = vld [vmem:[#allocation2 + $0x78] sm:$0xff]
    %v44 = vld [vmem:[%s0] sm:$0x1]
    %v45 = vld [vmem:[%s0 + $0x1] sm:$0x1]
    %v46 = vld [vmem:[%s0 + $0x2] sm:$0x1]
    %v47 = vld [vmem:[%s0 + $0x3] sm:$0x1]
    %v48 = vlaneseq
    %v49 = vshrl.u32 %v48, 7
    %v50 = vadd.s32 %v49, 8
    %v51 = vadd.s32 %v49, 16
    %v52 = vadd.s32 %v49, 24
    %v53 = vperm.slane %v44, 0
    %v54 = vperm.slane %v45, 0
    %v55 = vperm.slane %v46, 0
    %v56 = vperm.slane %v47, 0
    %vm57 = vcmp.lt.s32.totalorder %v49, %v53
    %vm58 = vcmp.lt.s32.totalorder %v50, %v53
    %vm59 = vcmp.lt.s32.totalorder %v51, %v53
    %vm60 = vcmp.lt.s32.totalorder %v52, %v53
    %vm61 = vcmp.lt.s32.totalorder %v49, %v54
    %vm62 = vcmp.lt.s32.totalorder %v50, %v54
    %vm63 = vcmp.lt.s32.totalorder %v51, %v54
    %vm64 = vcmp.lt.s32.totalorder %v52, %v54
    %vm65 = vcmp.lt.s32.totalorder %v49, %v55
    %vm66 = vcmp.lt.s32.totalorder %v50, %v55
    %vm67 = vcmp.lt.s32.totalorder %v51, %v55
    %vm68 = vcmp.lt.s32.totalorder %v52, %v55
    %vm69 = vcmp.lt.s32.totalorder %v49, %v56
    %vm70 = vcmp.lt.s32.totalorder %v50, %v56
    %vm71 = vcmp.lt.s32.totalorder %v51, %v56
    %vm72 = vcmp.lt.s32.totalorder %v52, %v56
    %vm73 = vcmp.gt.s32.totalorder %v49, %v53
    %vm74 = vcmp.gt.s32.totalorder %v50, %v53
    %vm75 = vcmp.gt.s32.totalorder %v51, %v53
    %vm76 = vcmp.gt.s32.totalorder %v52, %v53
    %vm77 = vcmp.gt.s32.totalorder %v49, %v54
    %vm78 = vcmp.gt.s32.totalorder %v50, %v54
    %vm79 = vcmp.gt.s32.totalorder %v51, %v54
    %vm80 = vcmp.gt.s32.totalorder %v52, %v54
    %vm81 = vcmp.gt.s32.totalorder %v49, %v55
    %vm82 = vcmp.gt.s32.totalorder %v50, %v55
    %vm83 = vcmp.gt.s32.totalorder %v51, %v55
    %vm84 = vcmp.gt.s32.totalorder %v52, %v55
    %vm85 = vcmp.gt.s32.totalorder %v49, %v56
    %vm86 = vcmp.gt.s32.totalorder %v50, %v56
    %vm87 = vcmp.gt.s32.totalorder %v51, %v56
    %vm88 = vcmp.gt.s32.totalorder %v52, %v56
    %v89 = vsel %vm57, 1, 0
    %v90 = vsel %vm58, 1, 0
    %v91 = vsel %vm59, 1, 0
    %v92 = vsel %vm60, 1, 0
    %v93 = vsel %vm61, 1, 0
    %v94 = vsel %vm62, 1, 0
    %v95 = vsel %vm63, 1, 0
    %v96 = vsel %vm64, 1, 0
    %v97 = vsel %vm65, 1, 0
    %v98 = vsel %vm66, 1, 0
    %v99 = vsel %vm67, 1, 0
    %v100 = vsel %vm68, 1, 0
    %v101 = vsel %vm69, 1, 0
    %v102 = vsel %vm70, 1, 0
    %v103 = vsel %vm71, 1, 0
    %v104 = vsel %vm72, 1, 0
    %105 = vrot.lane.b32.xlu0 %v89, 127
    %v106 = vpop.permute.xlu0 %105
    %107 = vrot.lane.b32.xlu0 %v90, 127
    %v108 = vpop.permute.xlu0 %107
    %109 = vrot.lane.b32.xlu0 %v91, 127
    %v110 = vpop.permute.xlu0 %109
    %111 = vrot.lane.b32.xlu0 %v92, 127
    %v112 = vpop.permute.xlu0 %111
    %113 = vrot.lane.b32.xlu0 %v93, 127
    %v114 = vpop.permute.xlu0 %113
    %115 = vrot.lane.b32.xlu0 %v94, 127
    %v116 = vpop.permute.xlu0 %115
    %117 = vrot.lane.b32.xlu0 %v95, 127
    %v118 = vpop.permute.xlu0 %117
    %119 = vrot.lane.b32.xlu0 %v96, 127
    %v120 = vpop.permute.xlu0 %119
    %121 = vrot.lane.b32.xlu0 %v97, 127
    %v122 = vpop.permute.xlu0 %121
    %123 = vrot.lane.b32.xlu0 %v98, 127
    %v124 = vpop.permute.xlu0 %123
    %125 = vrot.lane.b32.xlu0 %v99, 127
    %v126 = vpop.permute.xlu0 %125
    %127 = vrot.lane.b32.xlu0 %v100, 127
    %v128 = vpop.permute.xlu0 %127
    %129 = vrot.lane.b32.xlu0 %v101, 127
    %v130 = vpop.permute.xlu0 %129
    %131 = vrot.lane.b32.xlu0 %v102, 127
    %v132 = vpop.permute.xlu0 %131
    %133 = vrot.lane.b32.xlu0 %v103, 127
    %v134 = vpop.permute.xlu0 %133
    %135 = vrot.lane.b32.xlu0 %v104, 127
    %v136 = vpop.permute.xlu0 %135
    %vm137 = vcmp.ne.s32.totalorder %v106, 0
    %vm138 = vcmp.ne.s32.totalorder %v108, 0
    %vm139 = vcmp.ne.s32.totalorder %v110, 0
    %vm140 = vcmp.ne.s32.totalorder %v112, 0
    %vm141 = vcmp.ne.s32.totalorder %v114, 0
    %vm142 = vcmp.ne.s32.totalorder %v116, 0
    %vm143 = vcmp.ne.s32.totalorder %v118, 0
    %vm144 = vcmp.ne.s32.totalorder %v120, 0
    %vm145 = vcmp.ne.s32.totalorder %v122, 0
    %vm146 = vcmp.ne.s32.totalorder %v124, 0
    %vm147 = vcmp.ne.s32.totalorder %v126, 0
    %vm148 = vcmp.ne.s32.totalorder %v128, 0
    %vm149 = vcmp.ne.s32.totalorder %v130, 0
    %vm150 = vcmp.ne.s32.totalorder %v132, 0
    %vm151 = vcmp.ne.s32.totalorder %v134, 0
    %vm152 = vcmp.ne.s32.totalorder %v136, 0
    %vm153 = vmand %vm73, %vm137
    %vm154 = vmand %vm74, %vm138
    %vm155 = vmand %vm75, %vm139
    %vm156 = vmand %vm76, %vm140
    %vm157 = vmand %vm77, %vm141
    %vm158 = vmand %vm78, %vm142
    %vm159 = vmand %vm79, %vm143
    %vm160 = vmand %vm80, %vm144
    %vm161 = vmand %vm81, %vm145
    %vm162 = vmand %vm82, %vm146
    %vm163 = vmand %vm83, %vm147
    %vm164 = vmand %vm84, %vm148
    %vm165 = vmand %vm85, %vm149
    %vm166 = vmand %vm86, %vm150
    %vm167 = vmand %vm87, %vm151
    %vm168 = vmand %vm88, %vm152
    %v169 = vsel %vm153, 1, 0
    %v170 = vsel %vm154, 1, 0
    %v171 = vsel %vm155, 1, 0
    %v172 = vsel %vm156, 1, 0
    %v173 = vsel %vm157, 1, 0
    %v174 = vsel %vm158, 1, 0
    %v175 = vsel %vm159, 1, 0
    %v176 = vsel %vm160, 1, 0
    %v177 = vsel %vm161, 1, 0
    %v178 = vsel %vm162, 1, 0
    %v179 = vsel %vm163, 1, 0
    %v180 = vsel %vm164, 1, 0
    %v181 = vsel %vm165, 1, 0
    %v182 = vsel %vm166, 1, 0
    %v183 = vsel %vm167, 1, 0
    %v184 = vsel %vm168, 1, 0
    %v185 = vcvt.s32.f32 %v169
    %v186 = vcvt.s32.f32 %v170
    %v187 = vcvt.s32.f32 %v171
    %v188 = vcvt.s32.f32 %v172
    %v189 = vcvt.s32.f32 %v173
    %v190 = vcvt.s32.f32 %v174
    %v191 = vcvt.s32.f32 %v175
    %v192 = vcvt.s32.f32 %v176
    %v193 = vcvt.s32.f32 %v177
    %v194 = vcvt.s32.f32 %v178
    %v195 = vcvt.s32.f32 %v179
    %v196 = vcvt.s32.f32 %v180
    %v197 = vcvt.s32.f32 %v181
    %v198 = vcvt.s32.f32 %v182
    %v199 = vcvt.s32.f32 %v183
    %v200 = vcvt.s32.f32 %v184
    %vm201 = vcmask 15368
    %v202 = vsel %vm201, %v185, 0.0
    %v203 = vsel %vm201, %v186, 0.0
    %v204 = vadd.f32 %v202, %v203
    %v205 = vsel %vm201, %v187, 0.0
    %v206 = vadd.f32 %v204, %v205
    %v207 = vsel %vm201, %v188, 0.0
    %v208 = vadd.f32 %v206, %v207
    %v209 = vrot.slane %v208, 4
    %v210 = vadd.f32 %v208, %v209
    %v211 = vrot.slane %v210, 2
    %v212 = vadd.f32 %v210, %v211
    %v213 = vrot.slane %v212, 1
    %v214 = vadd.f32 %v212, %v213
    %v215 = vsel %vm201, %v189, 0.0
    %v216 = vsel %vm201, %v190, 0.0
    %v217 = vadd.f32 %v215, %v216
    %v218 = vsel %vm201, %v191, 0.0
    %v219 = vadd.f32 %v217, %v218
    %v220 = vsel %vm201, %v192, 0.0
    %v221 = vadd.f32 %v219, %v220
    %v222 = vrot.slane %v221, 4
    %v223 = vadd.f32 %v221, %v222
    %v224 = vrot.slane %v223, 2
    %v225 = vadd.f32 %v223, %v224
    %v226 = vrot.slane %v225, 1
    %v227 = vadd.f32 %v225, %v226
    %v228 = vsel %vm201, %v193, 0.0
    %v229 = vsel %vm201, %v194, 0.0
    %v230 = vadd.f32 %v228, %v229
    %v231 = vsel %vm201, %v195, 0.0
    %v232 = vadd.f32 %v230, %v231
    %v233 = vsel %vm201, %v196, 0.0
    %v234 = vadd.f32 %v232, %v233
    %v235 = vrot.slane %v234, 4
    %v236 = vadd.f32 %v234, %v235
    %v237 = vrot.slane %v236, 2
    %v238 = vadd.f32 %v236, %v237
    %v239 = vrot.slane %v238, 1
    %v240 = vadd.f32 %v238, %v239
    %v241 = vsel %vm201, %v197, 0.0
    %v242 = vsel %vm201, %v198, 0.0
    %v243 = vadd.f32 %v241, %v242
    %v244 = vsel %vm201, %v199, 0.0
    %v245 = vadd.f32 %v243, %v244
    %v246 = vsel %vm201, %v200, 0.0
    %v247 = vadd.f32 %v245, %v246
    %v248 = vrot.slane %v247, 4
    %v249 = vadd.f32 %v247, %v248
    %v250 = vrot.slane %v249, 2
    %v251 = vadd.f32 %v249, %v250
    %v252 = vrot.slane %v251, 1
    %v253 = vadd.f32 %v251, %v252
    %v254 = vmax.f32 %v214, 1.0
    %v255 = vmax.f32 %v227, 1.0
    %v256 = vmax.f32 %v240, 1.0
    %v257 = vmax.f32 %v253, 1.0
    %259 = vset.pattern.permute.xlu0 1
    %260 = vperm.xlu0 %259, %v185
    %v261 = vpop.permute.xlu0 %260
    %264 = vset.pattern.permute.xlu0 1
    %265 = vperm.xlu0 %264, %v186
    %v266 = vpop.permute.xlu0 %265
    %269 = vset.pattern.permute.xlu0 1
    %270 = vperm.xlu0 %269, %v187
    %v271 = vpop.permute.xlu0 %270
    %274 = vset.pattern.permute.xlu0 1
    %275 = vperm.xlu0 %274, %v188
    %v276 = vpop.permute.xlu0 %275
    %279 = vset.pattern.permute.xlu0 1
    %280 = vperm.xlu0 %279, %v189
    %v281 = vpop.permute.xlu0 %280
    %284 = vset.pattern.permute.xlu0 1
    %285 = vperm.xlu0 %284, %v190
    %v286 = vpop.permute.xlu0 %285
    %289 = vset.pattern.permute.xlu0 1
    %290 = vperm.xlu0 %289, %v191
    %v291 = vpop.permute.xlu0 %290
    %294 = vset.pattern.permute.xlu0 1
    %295 = vperm.xlu0 %294, %v192
    %v296 = vpop.permute.xlu0 %295
    %299 = vset.pattern.permute.xlu0 1
    %300 = vperm.xlu0 %299, %v193
    %v301 = vpop.permute.xlu0 %300
    %304 = vset.pattern.permute.xlu0 1
    %305 = vperm.xlu0 %304, %v194
    %v306 = vpop.permute.xlu0 %305
    %309 = vset.pattern.permute.xlu0 1
    %310 = vperm.xlu0 %309, %v195
    %v311 = vpop.permute.xlu0 %310
    %314 = vset.pattern.permute.xlu0 1
    %315 = vperm.xlu0 %314, %v196
    %v316 = vpop.permute.xlu0 %315
    %319 = vset.pattern.permute.xlu0 1
    %320 = vperm.xlu0 %319, %v197
    %v321 = vpop.permute.xlu0 %320
    %324 = vset.pattern.permute.xlu0 1
    %325 = vperm.xlu0 %324, %v198
    %v326 = vpop.permute.xlu0 %325
    %329 = vset.pattern.permute.xlu0 1
    %330 = vperm.xlu0 %329, %v199
    %v331 = vpop.permute.xlu0 %330
    %334 = vset.pattern.permute.xlu0 1
    %335 = vperm.xlu0 %334, %v200
    %v336 = vpop.permute.xlu0 %335
    %v338 = vmul.f32 %v28, %v261
    %v339 = vmul.f32 %v29, %v266
    %v340 = vmul.f32 %v30, %v271
    %v341 = vmul.f32 %v31, %v276
    %v342 = vmul.f32 %v32, %v281
    %v343 = vmul.f32 %v33, %v286
    %v344 = vmul.f32 %v34, %v291
    %v345 = vmul.f32 %v35, %v296
    %v346 = vmul.f32 %v36, %v301
    %v347 = vmul.f32 %v37, %v306
    %v348 = vmul.f32 %v38, %v311
    %v349 = vmul.f32 %v39, %v316
    %v350 = vmul.f32 %v40, %v321
    %v351 = vmul.f32 %v41, %v326
    %v352 = vmul.f32 %v42, %v331
    %v353 = vmul.f32 %v43, %v336
    %v354 = vadd.f32 %v338, %v339
    %v355 = vadd.f32 %v354, %v340
    %v356 = vadd.f32 %v355, %v341
    %v357 = vrot.slane %v356, 4
    %v358 = vadd.f32 %v356, %v357
    %v359 = vrot.slane %v358, 2
    %v360 = vadd.f32 %v358, %v359
    %v361 = vrot.slane %v360, 1
    %v362 = vadd.f32 %v360, %v361
    %v363 = vadd.f32 %v342, %v343
    %v364 = vadd.f32 %v363, %v344
    %v365 = vadd.f32 %v364, %v345
    %v366 = vrot.slane %v365, 4
    %v367 = vadd.f32 %v365, %v366
    %v368 = vrot.slane %v367, 2
    %v369 = vadd.f32 %v367, %v368
    %v370 = vrot.slane %v369, 1
    %v371 = vadd.f32 %v369, %v370
    %v372 = vadd.f32 %v346, %v347
    %v373 = vadd.f32 %v372, %v348
    %v374 = vadd.f32 %v373, %v349
    %v375 = vrot.slane %v374, 4
    %v376 = vadd.f32 %v374, %v375
    %v377 = vrot.slane %v376, 2
    %v378 = vadd.f32 %v376, %v377
    %v379 = vrot.slane %v378, 1
    %v380 = vadd.f32 %v378, %v379
    %v381 = vadd.f32 %v350, %v351
    %v382 = vadd.f32 %v381, %v352
    %v383 = vadd.f32 %v382, %v353
    %v384 = vrot.slane %v383, 4
    %v385 = vadd.f32 %v383, %v384
    %v386 = vrot.slane %v385, 2
    %v387 = vadd.f32 %v385, %v386
    %v388 = vrot.slane %v387, 1
    %v389 = vadd.f32 %v387, %v388
    %391 = vset.pattern.permute.xlu0 1
    %392 = vperm.xlu0 %391, %v254
    %v393 = vpop.permute.xlu0 %392
    %396 = vset.pattern.permute.xlu0 1
    %397 = vperm.xlu0 %396, %v255
    %v398 = vpop.permute.xlu0 %397
    %401 = vset.pattern.permute.xlu0 1
    %402 = vperm.xlu0 %401, %v256
    %v403 = vpop.permute.xlu0 %402
    %406 = vset.pattern.permute.xlu0 1
    %407 = vperm.xlu0 %406, %v257
    %v408 = vpop.permute.xlu0 %407
    %v410 = vrcp.pop %v393
    %v411 = vmul.f32 %v393, %v410
    %v412 = vsub.f32 1.0, %v411
    %v413 = vmul.f32 %v410, %v412
    %v414 = vadd.f32 %v410, %v413
    %vm415 = vweird.f32 %v393
    %vm416 = vweird.f32 %v410
    %vm417 = vmor %vm415, %vm416
    %v418 = vsel %vm417, %v410, %v414
    %v419 = vand.u32 2147483647, %v393
    %vm420 = vcmp.eq.f32.partialorder %v419, 8.507059e+37
    %v421 = vand.u32 %v393, 2147483648
    %v422 = vor.u32 1.1754944e-38, %v421
    %v423 = vsel %vm420, %v422, %v418
    %v424 = vmul.f32 %v362, %v423
    %v425 = vrcp.pop %v398
    %v426 = vmul.f32 %v398, %v425
    %v427 = vsub.f32 1.0, %v426
    %v428 = vmul.f32 %v425, %v427
    %v429 = vadd.f32 %v425, %v428
    %vm430 = vweird.f32 %v398
    %vm431 = vweird.f32 %v425
    %vm432 = vmor %vm430, %vm431
    %v433 = vsel %vm432, %v425, %v429
    %v434 = vand.u32 2147483647, %v398
    %vm435 = vcmp.eq.f32.partialorder %v434, 8.507059e+37
    %v436 = vand.u32 %v398, 2147483648
    %v437 = vor.u32 1.1754944e-38, %v436
    %v438 = vsel %vm435, %v437, %v433
    %v439 = vmul.f32 %v371, %v438
    %v440 = vrcp.pop %v403
    %v441 = vmul.f32 %v403, %v440
    %v442 = vsub.f32 1.0, %v441
    %v443 = vmul.f32 %v440, %v442
    %v444 = vadd.f32 %v440, %v443
    %vm445 = vweird.f32 %v403
    %vm446 = vweird.f32 %v440
    %vm447 = vmor %vm445, %vm446
    %v448 = vsel %vm447, %v440, %v444
    %v449 = vand.u32 2147483647, %v403
    %vm450 = vcmp.eq.f32.partialorder %v449, 8.507059e+37
    %v451 = vand.u32 %v403, 2147483648
    %v452 = vor.u32 1.1754944e-38, %v451
    %v453 = vsel %vm450, %v452, %v448
    %v454 = vmul.f32 %v380, %v453
    %v455 = vrcp.pop %v408
    %v456 = vmul.f32 %v408, %v455
    %v457 = vsub.f32 1.0, %v456
    %v458 = vmul.f32 %v455, %v457
    %v459 = vadd.f32 %v455, %v458
    %vm460 = vweird.f32 %v408
    %vm461 = vweird.f32 %v455
    %vm462 = vmor %vm460, %vm461
    %v463 = vsel %vm462, %v455, %v459
    %v464 = vand.u32 2147483647, %v408
    %vm465 = vcmp.eq.f32.partialorder %v464, 8.507059e+37
    %v466 = vand.u32 %v408, 2147483648
    %v467 = vor.u32 1.1754944e-38, %v466
    %v468 = vsel %vm465, %v467, %v463
    %v469 = vmul.f32 %v389, %v468
    %470 = vrot.lane.b32.xlu0 %v44, 1
    %v471 = vpop.permute.xlu0 %470
    %472 = vrot.lane.b32.xlu0 %v45, 1
    %v473 = vpop.permute.xlu0 %472
    %474 = vrot.lane.b32.xlu0 %v46, 1
    %v475 = vpop.permute.xlu0 %474
    %476 = vrot.lane.b32.xlu0 %v47, 1
    %v477 = vpop.permute.xlu0 %476
    %v478 = vsub.s32 %v44, %v471
    %v479 = vsub.s32 %v45, %v473
    %v480 = vsub.s32 %v46, %v475
    %v481 = vsub.s32 %v47, %v477
    %v482 = vsub.s32 %v478, 1
    %v483 = vsub.s32 %v479, 1
    %v484 = vsub.s32 %v480, 1
    %v485 = vsub.s32 %v481, 1
    %vm486 = vcmp.gt.s32.totalorder %v482, 1
    %v487 = vsel %vm486, %v482, 1
    %vm488 = vcmp.gt.s32.totalorder %v483, 1
    %v489 = vsel %vm488, %v483, 1
    %vm490 = vcmp.gt.s32.totalorder %v484, 1
    %v491 = vsel %vm490, %v484, 1
    %vm492 = vcmp.gt.s32.totalorder %v485, 1
    %v493 = vsel %vm492, %v485, 1
    %v494 = vcvt.s32.f32 %v487
    %v495 = vcvt.s32.f32 %v489
    %v496 = vcvt.s32.f32 %v491
    %v497 = vcvt.s32.f32 %v493
    %vm498 = vcmp.gt.s32.totalorder %v44, 1
    %v499 = vsel %vm498, %v44, 1
    %vm500 = vcmp.gt.s32.totalorder %v45, 1
    %v501 = vsel %vm500, %v45, 1
    %vm502 = vcmp.gt.s32.totalorder %v46, 1
    %v503 = vsel %vm502, %v46, 1
    %vm504 = vcmp.gt.s32.totalorder %v47, 1
    %v505 = vsel %vm504, %v47, 1
    %v506 = vcvt.s32.f32 %v499
    %v507 = vcvt.s32.f32 %v501
    %v508 = vcvt.s32.f32 %v503
    %v509 = vcvt.s32.f32 %v505
    %v510 = vmul.f32 %v28, %v424
    %v511 = vmul.f32 %v29, %v424
    %v512 = vmul.f32 %v30, %v424
    %v513 = vmul.f32 %v31, %v424
    %v514 = vmul.f32 %v32, %v439
    %v515 = vmul.f32 %v33, %v439
    %v516 = vmul.f32 %v34, %v439
    %v517 = vmul.f32 %v35, %v439
    %v518 = vmul.f32 %v36, %v454
    %v519 = vmul.f32 %v37, %v454
    %v520 = vmul.f32 %v38, %v454
    %v521 = vmul.f32 %v39, %v454
    %v522 = vmul.f32 %v40, %v469
    %v523 = vmul.f32 %v41, %v469
    %v524 = vmul.f32 %v42, %v469
    %v525 = vmul.f32 %v43, %v469
    %526 = vadd.xlane.f32.xlu0 %v510
    %v527 = vpop.xlane.xlu0 %526
    %528 = vadd.xlane.f32.xlu0 %v511
    %v529 = vpop.xlane.xlu0 %528
    %530 = vadd.xlane.f32.xlu0 %v512
    %v531 = vpop.xlane.xlu0 %530
    %532 = vadd.xlane.f32.xlu0 %v513
    %v533 = vpop.xlane.xlu0 %532
    %534 = vadd.xlane.f32.xlu0 %v514
    %v535 = vpop.xlane.xlu0 %534
    %536 = vadd.xlane.f32.xlu0 %v515
    %v537 = vpop.xlane.xlu0 %536
    %538 = vadd.xlane.f32.xlu0 %v516
    %v539 = vpop.xlane.xlu0 %538
    %540 = vadd.xlane.f32.xlu0 %v517
    %v541 = vpop.xlane.xlu0 %540
    %542 = vadd.xlane.f32.xlu0 %v518
    %v543 = vpop.xlane.xlu0 %542
    %544 = vadd.xlane.f32.xlu0 %v519
    %v545 = vpop.xlane.xlu0 %544
    %546 = vadd.xlane.f32.xlu0 %v520
    %v547 = vpop.xlane.xlu0 %546
    %548 = vadd.xlane.f32.xlu0 %v521
    %v549 = vpop.xlane.xlu0 %548
    %550 = vadd.xlane.f32.xlu0 %v522
    %v551 = vpop.xlane.xlu0 %550
    %552 = vadd.xlane.f32.xlu0 %v523
    %v553 = vpop.xlane.xlu0 %552
    %554 = vadd.xlane.f32.xlu0 %v524
    %v555 = vpop.xlane.xlu0 %554
    %556 = vadd.xlane.f32.xlu0 %v525
    %v557 = vpop.xlane.xlu0 %556
    %v558 = vrsqrt.pop %v494
    %v559 = vmul.f32 %v558, %v494
    %v560 = vmul.f32 %v559, %v558
    %v561 = vmul.f32 0.5, %v560
    %v562 = vsub.f32 1.5, %v561
    %v563 = vmul.f32 %v558, %v562
    %vm564 = vweird.f32 %v494
    %vm565 = vweird.f32 %v558
    %vm566 = vmor %vm564, %vm565
    %v567 = vsel %vm566, %v558, %v563
    %v568 = vrsqrt.pop %v495
    %v569 = vmul.f32 %v568, %v495
    %v570 = vmul.f32 %v569, %v568
    %v571 = vmul.f32 0.5, %v570
    %v572 = vsub.f32 1.5, %v571
    %v573 = vmul.f32 %v568, %v572
    %vm574 = vweird.f32 %v495
    %vm575 = vweird.f32 %v568
    %vm576 = vmor %vm574, %vm575
    %v577 = vsel %vm576, %v568, %v573
    %v578 = vrsqrt.pop %v496
    %v579 = vmul.f32 %v578, %v496
    %v580 = vmul.f32 %v579, %v578
    %v581 = vmul.f32 0.5, %v580
    %v582 = vsub.f32 1.5, %v581
    %v583 = vmul.f32 %v578, %v582
    %vm584 = vweird.f32 %v496
    %vm585 = vweird.f32 %v578
    %vm586 = vmor %vm584, %vm585
    %v587 = vsel %vm586, %v578, %v583
    %v588 = vrsqrt.pop %v497
    %v589 = vmul.f32 %v588, %v497
    %v590 = vmul.f32 %v589, %v588
    %v591 = vmul.f32 0.5, %v590
    %v592 = vsub.f32 1.5, %v591
    %v593 = vmul.f32 %v588, %v592
    %vm594 = vweird.f32 %v497
    %vm595 = vweird.f32 %v588
    %vm596 = vmor %vm594, %vm595
    %v597 = vsel %vm596, %v588, %v593
    %v602 = vperm.slane %v567, 0
    %v603 = vperm.slane %v577, 0
    %v604 = vperm.slane %v587, 0
    %v605 = vperm.slane %v597, 0
    %v610 = vmul.f32 %v527, %v602
    %v611 = vmul.f32 %v529, %v602
    %v612 = vmul.f32 %v531, %v602
    %v613 = vmul.f32 %v533, %v602
    %v614 = vmul.f32 %v535, %v603
    %v615 = vmul.f32 %v537, %v603
    %v616 = vmul.f32 %v539, %v603
    %v617 = vmul.f32 %v541, %v603
    %v618 = vmul.f32 %v543, %v604
    %v619 = vmul.f32 %v545, %v604
    %v620 = vmul.f32 %v547, %v604
    %v621 = vmul.f32 %v549, %v604
    %v622 = vmul.f32 %v551, %v605
    %v623 = vmul.f32 %v553, %v605
    %v624 = vmul.f32 %v555, %v605
    %v625 = vmul.f32 %v557, %v605
    %642 = vrot.lane.b32.xlu0 %v610, 127
    %v643 = vpop.permute.xlu0 %642
    %644 = vrot.lane.b32.xlu0 %v611, 127
    %v645 = vpop.permute.xlu0 %644
    %646 = vrot.lane.b32.xlu0 %v612, 127
    %v647 = vpop.permute.xlu0 %646
    %648 = vrot.lane.b32.xlu0 %v613, 127
    %v649 = vpop.permute.xlu0 %648
    %650 = vrot.lane.b32.xlu0 %v614, 127
    %v651 = vpop.permute.xlu0 %650
    %652 = vrot.lane.b32.xlu0 %v615, 127
    %v653 = vpop.permute.xlu0 %652
    %654 = vrot.lane.b32.xlu0 %v616, 127
    %v655 = vpop.permute.xlu0 %654
    %656 = vrot.lane.b32.xlu0 %v617, 127
    %v657 = vpop.permute.xlu0 %656
    %658 = vrot.lane.b32.xlu0 %v618, 127
    %v659 = vpop.permute.xlu0 %658
    %660 = vrot.lane.b32.xlu0 %v619, 127
    %v661 = vpop.permute.xlu0 %660
    %662 = vrot.lane.b32.xlu0 %v620, 127
    %v663 = vpop.permute.xlu0 %662
    %664 = vrot.lane.b32.xlu0 %v621, 127
    %v665 = vpop.permute.xlu0 %664
    %666 = vrot.lane.b32.xlu0 %v622, 127
    %v667 = vpop.permute.xlu0 %666
    %668 = vrot.lane.b32.xlu0 %v623, 127
    %v669 = vpop.permute.xlu0 %668
    %670 = vrot.lane.b32.xlu0 %v624, 127
    %v671 = vpop.permute.xlu0 %670
    %672 = vrot.lane.b32.xlu0 %v625, 127
    %v673 = vpop.permute.xlu0 %672
    %v690 = vsel %vm153, %v643, -1e+30
    %v691 = vsel %vm154, %v645, -1e+30
    %v692 = vsel %vm155, %v647, -1e+30
    %v693 = vsel %vm156, %v649, -1e+30
    %v694 = vsel %vm157, %v651, -1e+30
    %v695 = vsel %vm158, %v653, -1e+30
    %v696 = vsel %vm159, %v655, -1e+30
    %v697 = vsel %vm160, %v657, -1e+30
    %v698 = vsel %vm161, %v659, -1e+30
    %v699 = vsel %vm162, %v661, -1e+30
    %v700 = vsel %vm163, %v663, -1e+30
    %v701 = vsel %vm164, %v665, -1e+30
    %v702 = vsel %vm165, %v667, -1e+30
    %v703 = vsel %vm166, %v669, -1e+30
    %v704 = vsel %vm167, %v671, -1e+30
    %v705 = vsel %vm168, %v673, -1e+30
    %vm706 = vcmask 7168
    %v707 = vsel %vm706, %v690, -inf
    %v708 = vsel %vm706, %v691, -inf
    %v709 = vmax.f32 %v707, %v708
    %v710 = vsel %vm706, %v692, -inf
    %v711 = vmax.f32 %v709, %v710
    %v712 = vsel %vm706, %v693, -inf
    %v713 = vmax.f32 %v711, %v712
    %v714 = vrot.slane %v713, 4
    %v715 = vmax.f32 %v713, %v714
    %v716 = vrot.slane %v715, 2
    %v717 = vmax.f32 %v715, %v716
    %v718 = vrot.slane %v717, 1
    %v719 = vmax.f32 %v717, %v718
    %v720 = vsel %vm706, %v694, -inf
    %v721 = vsel %vm706, %v695, -inf
    %v722 = vmax.f32 %v720, %v721
    %v723 = vsel %vm706, %v696, -inf
    %v724 = vmax.f32 %v722, %v723
    %v725 = vsel %vm706, %v697, -inf
    %v726 = vmax.f32 %v724, %v725
    %v727 = vrot.slane %v726, 4
    %v728 = vmax.f32 %v726, %v727
    %v729 = vrot.slane %v728, 2
    %v730 = vmax.f32 %v728, %v729
    %v731 = vrot.slane %v730, 1
    %v732 = vmax.f32 %v730, %v731
    %v733 = vsel %vm706, %v698, -inf
    %v734 = vsel %vm706, %v699, -inf
    %v735 = vmax.f32 %v733, %v734
    %v736 = vsel %vm706, %v700, -inf
    %v737 = vmax.f32 %v735, %v736
    %v738 = vsel %vm706, %v701, -inf
    %v739 = vmax.f32 %v737, %v738
    %v740 = vrot.slane %v739, 4
    %v741 = vmax.f32 %v739, %v740
    %v742 = vrot.slane %v741, 2
    %v743 = vmax.f32 %v741, %v742
    %v744 = vrot.slane %v743, 1
    %v745 = vmax.f32 %v743, %v744
    %v746 = vsel %vm706, %v702, -inf
    %v747 = vsel %vm706, %v703, -inf
    %v748 = vmax.f32 %v746, %v747
    %v749 = vsel %vm706, %v704, -inf
    %v750 = vmax.f32 %v748, %v749
    %v751 = vsel %vm706, %v705, -inf
    %v752 = vmax.f32 %v750, %v751
    %v753 = vrot.slane %v752, 4
    %v754 = vmax.f32 %v752, %v753
    %v755 = vrot.slane %v754, 2
    %v756 = vmax.f32 %v754, %v755
    %v757 = vrot.slane %v756, 1
    %v758 = vmax.f32 %v756, %v757
    %v759 = vsub.f32 %v690, %v719
    %v760 = vsub.f32 %v691, %v719
    %v761 = vsub.f32 %v692, %v719
    %v762 = vsub.f32 %v693, %v719
    %v763 = vsub.f32 %v694, %v732
    %v764 = vsub.f32 %v695, %v732
    %v765 = vsub.f32 %v696, %v732
    %v766 = vsub.f32 %v697, %v732
    %v767 = vsub.f32 %v698, %v745
    %v768 = vsub.f32 %v699, %v745
    %v769 = vsub.f32 %v700, %v745
    %v770 = vsub.f32 %v701, %v745
    %v771 = vsub.f32 %v702, %v758
    %v772 = vsub.f32 %v703, %v758
    %v773 = vsub.f32 %v704, %v758
    %v774 = vsub.f32 %v705, %v758
    %v775 = vmul.f32 %v759, 1.442695
    %v776 = vpow.pop %v775
    %v777 = vmul.f32 %v760, 1.442695
    %v778 = vpow.pop %v777
    %v779 = vmul.f32 %v761, 1.442695
    %v780 = vpow.pop %v779
    %v781 = vmul.f32 %v762, 1.442695
    %v782 = vpow.pop %v781
    %v783 = vmul.f32 %v763, 1.442695
    %v784 = vpow.pop %v783
    %v785 = vmul.f32 %v764, 1.442695
    %v786 = vpow.pop %v785
    %v787 = vmul.f32 %v765, 1.442695
    %v788 = vpow.pop %v787
    %v789 = vmul.f32 %v766, 1.442695
    %v790 = vpow.pop %v789
    %v791 = vmul.f32 %v767, 1.442695
    %v792 = vpow.pop %v791
    %v793 = vmul.f32 %v768, 1.442695
    %v794 = vpow.pop %v793
    %v795 = vmul.f32 %v769, 1.442695
    %v796 = vpow.pop %v795
    %v797 = vmul.f32 %v770, 1.442695
    %v798 = vpow.pop %v797
    %v799 = vmul.f32 %v771, 1.442695
    %v800 = vpow.pop %v799
    %v801 = vmul.f32 %v772, 1.442695
    %v802 = vpow.pop %v801
    %v803 = vmul.f32 %v773, 1.442695
    %v804 = vpow.pop %v803
    %v805 = vmul.f32 %v774, 1.442695
    %v806 = vpow.pop %v805
    %v807 = vsel %vm706, %v776, 0.0
    %v808 = vsel %vm706, %v778, 0.0
    %v809 = vadd.f32 %v807, %v808
    %v810 = vsel %vm706, %v780, 0.0
    %v811 = vadd.f32 %v809, %v810
    %v812 = vsel %vm706, %v782, 0.0
    %v813 = vadd.f32 %v811, %v812
    %v814 = vrot.slane %v813, 4
    %v815 = vadd.f32 %v813, %v814
    %v816 = vrot.slane %v815, 2
    %v817 = vadd.f32 %v815, %v816
    %v818 = vrot.slane %v817, 1
    %v819 = vadd.f32 %v817, %v818
    %v820 = vsel %vm706, %v784, 0.0
    %v821 = vsel %vm706, %v786, 0.0
    %v822 = vadd.f32 %v820, %v821
    %v823 = vsel %vm706, %v788, 0.0
    %v824 = vadd.f32 %v822, %v823
    %v825 = vsel %vm706, %v790, 0.0
    %v826 = vadd.f32 %v824, %v825
    %v827 = vrot.slane %v826, 4
    %v828 = vadd.f32 %v826, %v827
    %v829 = vrot.slane %v828, 2
    %v830 = vadd.f32 %v828, %v829
    %v831 = vrot.slane %v830, 1
    %v832 = vadd.f32 %v830, %v831
    %v833 = vsel %vm706, %v792, 0.0
    %v834 = vsel %vm706, %v794, 0.0
    %v835 = vadd.f32 %v833, %v834
    %v836 = vsel %vm706, %v796, 0.0
    %v837 = vadd.f32 %v835, %v836
    %v838 = vsel %vm706, %v798, 0.0
    %v839 = vadd.f32 %v837, %v838
    %v840 = vrot.slane %v839, 4
    %v841 = vadd.f32 %v839, %v840
    %v842 = vrot.slane %v841, 2
    %v843 = vadd.f32 %v841, %v842
    %v844 = vrot.slane %v843, 1
    %v845 = vadd.f32 %v843, %v844
    %v846 = vsel %vm706, %v800, 0.0
    %v847 = vsel %vm706, %v802, 0.0
    %v848 = vadd.f32 %v846, %v847
    %v849 = vsel %vm706, %v804, 0.0
    %v850 = vadd.f32 %v848, %v849
    %v851 = vsel %vm706, %v806, 0.0
    %v852 = vadd.f32 %v850, %v851
    %v853 = vrot.slane %v852, 4
    %v854 = vadd.f32 %v852, %v853
    %v855 = vrot.slane %v854, 2
    %v856 = vadd.f32 %v854, %v855
    %v857 = vrot.slane %v856, 1
    %v858 = vadd.f32 %v856, %v857
    %v859 = vrcp.pop %v819
    %v860 = vmul.f32 %v819, %v859
    %v861 = vsub.f32 1.0, %v860
    %v862 = vmul.f32 %v859, %v861
    %v863 = vadd.f32 %v859, %v862
    %vm864 = vweird.f32 %v819
    %vm865 = vweird.f32 %v859
    %vm866 = vmor %vm864, %vm865
    %v867 = vsel %vm866, %v859, %v863
    %v868 = vand.u32 2147483647, %v819
    %vm869 = vcmp.eq.f32.partialorder %v868, 8.507059e+37
    %v870 = vand.u32 %v819, 2147483648
    %v871 = vor.u32 1.1754944e-38, %v870
    %v872 = vsel %vm869, %v871, %v867
    %v873 = vrcp.pop %v832
    %v874 = vmul.f32 %v832, %v873
    %v875 = vsub.f32 1.0, %v874
    %v876 = vmul.f32 %v873, %v875
    %v877 = vadd.f32 %v873, %v876
    %vm878 = vweird.f32 %v832
    %vm879 = vweird.f32 %v873
    %vm880 = vmor %vm878, %vm879
    %v881 = vsel %vm880, %v873, %v877
    %v882 = vand.u32 2147483647, %v832
    %vm883 = vcmp.eq.f32.partialorder %v882, 8.507059e+37
    %v884 = vand.u32 %v832, 2147483648
    %v885 = vor.u32 1.1754944e-38, %v884
    %v886 = vsel %vm883, %v885, %v881
    %v887 = vrcp.pop %v845
    %v888 = vmul.f32 %v845, %v887
    %v889 = vsub.f32 1.0, %v888
    %v890 = vmul.f32 %v887, %v889
    %v891 = vadd.f32 %v887, %v890
    %vm892 = vweird.f32 %v845
    %vm893 = vweird.f32 %v887
    %vm894 = vmor %vm892, %vm893
    %v895 = vsel %vm894, %v887, %v891
    %v896 = vand.u32 2147483647, %v845
    %vm897 = vcmp.eq.f32.partialorder %v896, 8.507059e+37
    %v898 = vand.u32 %v845, 2147483648
    %v899 = vor.u32 1.1754944e-38, %v898
    %v900 = vsel %vm897, %v899, %v895
    %v901 = vrcp.pop %v858
    %v902 = vmul.f32 %v858, %v901
    %v903 = vsub.f32 1.0, %v902
    %v904 = vmul.f32 %v901, %v903
    %v905 = vadd.f32 %v901, %v904
    %vm906 = vweird.f32 %v858
    %vm907 = vweird.f32 %v901
    %vm908 = vmor %vm906, %vm907
    %v909 = vsel %vm908, %v901, %v905
    %v910 = vand.u32 2147483647, %v858
    %vm911 = vcmp.eq.f32.partialorder %v910, 8.507059e+37
    %v912 = vand.u32 %v858, 2147483648
    %v913 = vor.u32 1.1754944e-38, %v912
    %v914 = vsel %vm911, %v913, %v909
    %v915 = vmul.f32 %v776, %v872
    %v916 = vmul.f32 %v778, %v872
    %v917 = vmul.f32 %v780, %v872
    %v918 = vmul.f32 %v782, %v872
    %v919 = vmul.f32 %v784, %v886
    %v920 = vmul.f32 %v786, %v886
    %v921 = vmul.f32 %v788, %v886
    %v922 = vmul.f32 %v790, %v886
    %v923 = vmul.f32 %v792, %v900
    %v924 = vmul.f32 %v794, %v900
    %v925 = vmul.f32 %v796, %v900
    %v926 = vmul.f32 %v798, %v900
    %v927 = vmul.f32 %v800, %v914
    %v928 = vmul.f32 %v802, %v914
    %v929 = vmul.f32 %v804, %v914
    %v930 = vmul.f32 %v806, %v914
    %932 = vset.pattern.permute.xlu0 0
    %933 = vperm.xlu0 %932, %v915
    %v934 = vpop.permute.xlu0 %933
    %937 = vset.pattern.permute.xlu0 0
    %938 = vperm.xlu0 %937, %v916
    %v939 = vpop.permute.xlu0 %938
    %942 = vset.pattern.permute.xlu0 0
    %943 = vperm.xlu0 %942, %v917
    %v944 = vpop.permute.xlu0 %943
    %947 = vset.pattern.permute.xlu0 0
    %948 = vperm.xlu0 %947, %v918
    %v949 = vpop.permute.xlu0 %948
    %952 = vset.pattern.permute.xlu0 0
    %953 = vperm.xlu0 %952, %v919
    %v954 = vpop.permute.xlu0 %953
    %957 = vset.pattern.permute.xlu0 0
    %958 = vperm.xlu0 %957, %v920
    %v959 = vpop.permute.xlu0 %958
    %962 = vset.pattern.permute.xlu0 0
    %963 = vperm.xlu0 %962, %v921
    %v964 = vpop.permute.xlu0 %963
    %967 = vset.pattern.permute.xlu0 0
    %968 = vperm.xlu0 %967, %v922
    %v969 = vpop.permute.xlu0 %968
    %972 = vset.pattern.permute.xlu0 0
    %973 = vperm.xlu0 %972, %v923
    %v974 = vpop.permute.xlu0 %973
    %977 = vset.pattern.permute.xlu0 0
    %978 = vperm.xlu0 %977, %v924
    %v979 = vpop.permute.xlu0 %978
    %982 = vset.pattern.permute.xlu0 0
    %983 = vperm.xlu0 %982, %v925
    %v984 = vpop.permute.xlu0 %983
    %987 = vset.pattern.permute.xlu0 0
    %988 = vperm.xlu0 %987, %v926
    %v989 = vpop.permute.xlu0 %988
    %992 = vset.pattern.permute.xlu0 0
    %993 = vperm.xlu0 %992, %v927
    %v994 = vpop.permute.xlu0 %993
    %997 = vset.pattern.permute.xlu0 0
    %998 = vperm.xlu0 %997, %v928
    %v999 = vpop.permute.xlu0 %998
    %1002 = vset.pattern.permute.xlu0 0
    %1003 = vperm.xlu0 %1002, %v929
    %v1004 = vpop.permute.xlu0 %1003
    %1007 = vset.pattern.permute.xlu0 0
    %1008 = vperm.xlu0 %1007, %v930
    %v1009 = vpop.permute.xlu0 %1008
    %v1011 = vmul.f32 %v934, %v28
    %v1012 = vmul.f32 %v939, %v29
    %v1013 = vmul.f32 %v944, %v30
    %v1014 = vmul.f32 %v949, %v31
    %v1015 = vmul.f32 %v954, %v32
    %v1016 = vmul.f32 %v959, %v33
    %v1017 = vmul.f32 %v964, %v34
    %v1018 = vmul.f32 %v969, %v35
    %v1019 = vmul.f32 %v974, %v36
    %v1020 = vmul.f32 %v979, %v37
    %v1021 = vmul.f32 %v984, %v38
    %v1022 = vmul.f32 %v989, %v39
    %v1023 = vmul.f32 %v994, %v40
    %v1024 = vmul.f32 %v999, %v41
    %v1025 = vmul.f32 %v1004, %v42
    %v1026 = vmul.f32 %v1009, %v43
    %v1027 = vadd.f32 %v1011, %v1012
    %v1028 = vadd.f32 %v1027, %v1013
    %v1029 = vadd.f32 %v1028, %v1014
    %v1030 = vrot.slane %v1029, 4
    %v1031 = vadd.f32 %v1029, %v1030
    %v1032 = vrot.slane %v1031, 2
    %v1033 = vadd.f32 %v1031, %v1032
    %v1034 = vrot.slane %v1033, 1
    %v1035 = vadd.f32 %v1033, %v1034
    %v1036 = vadd.f32 %v1015, %v1016
    %v1037 = vadd.f32 %v1036, %v1017
    %v1038 = vadd.f32 %v1037, %v1018
    %v1039 = vrot.slane %v1038, 4
    %v1040 = vadd.f32 %v1038, %v1039
    %v1041 = vrot.slane %v1040, 2
    %v1042 = vadd.f32 %v1040, %v1041
    %v1043 = vrot.slane %v1042, 1
    %v1044 = vadd.f32 %v1042, %v1043
    %v1045 = vadd.f32 %v1019, %v1020
    %v1046 = vadd.f32 %v1045, %v1021
    %v1047 = vadd.f32 %v1046, %v1022
    %v1048 = vrot.slane %v1047, 4
    %v1049 = vadd.f32 %v1047, %v1048
    %v1050 = vrot.slane %v1049, 2
    %v1051 = vadd.f32 %v1049, %v1050
    %v1052 = vrot.slane %v1051, 1
    %v1053 = vadd.f32 %v1051, %v1052
    %v1054 = vadd.f32 %v1023, %v1024
    %v1055 = vadd.f32 %v1054, %v1025
    %v1056 = vadd.f32 %v1055, %v1026
    %v1057 = vrot.slane %v1056, 4
    %v1058 = vadd.f32 %v1056, %v1057
    %v1059 = vrot.slane %v1058, 2
    %v1060 = vadd.f32 %v1058, %v1059
    %v1061 = vrot.slane %v1060, 1
    %v1062 = vadd.f32 %v1060, %v1061
    %v1063 = vmul.f32 %v28, %v1035
    %v1064 = vmul.f32 %v29, %v1035
    %v1065 = vmul.f32 %v30, %v1035
    %v1066 = vmul.f32 %v31, %v1035
    %v1067 = vmul.f32 %v32, %v1044
    %v1068 = vmul.f32 %v33, %v1044
    %v1069 = vmul.f32 %v34, %v1044
    %v1070 = vmul.f32 %v35, %v1044
    %v1071 = vmul.f32 %v36, %v1053
    %v1072 = vmul.f32 %v37, %v1053
    %v1073 = vmul.f32 %v38, %v1053
    %v1074 = vmul.f32 %v39, %v1053
    %v1075 = vmul.f32 %v40, %v1062
    %v1076 = vmul.f32 %v41, %v1062
    %v1077 = vmul.f32 %v42, %v1062
    %v1078 = vmul.f32 %v43, %v1062
    %1079 = vadd.xlane.f32.xlu0 %v1063
    %v1080 = vpop.xlane.xlu0 %1079
    %1081 = vadd.xlane.f32.xlu0 %v1064
    %v1082 = vpop.xlane.xlu0 %1081
    %1083 = vadd.xlane.f32.xlu0 %v1065
    %v1084 = vpop.xlane.xlu0 %1083
    %1085 = vadd.xlane.f32.xlu0 %v1066
    %v1086 = vpop.xlane.xlu0 %1085
    %1087 = vadd.xlane.f32.xlu0 %v1067
    %v1088 = vpop.xlane.xlu0 %1087
    %1089 = vadd.xlane.f32.xlu0 %v1068
    %v1090 = vpop.xlane.xlu0 %1089
    %1091 = vadd.xlane.f32.xlu0 %v1069
    %v1092 = vpop.xlane.xlu0 %1091
    %1093 = vadd.xlane.f32.xlu0 %v1070
    %v1094 = vpop.xlane.xlu0 %1093
    %1095 = vadd.xlane.f32.xlu0 %v1071
    %v1096 = vpop.xlane.xlu0 %1095
    %1097 = vadd.xlane.f32.xlu0 %v1072
    %v1098 = vpop.xlane.xlu0 %1097
    %1099 = vadd.xlane.f32.xlu0 %v1073
    %v1100 = vpop.xlane.xlu0 %1099
    %1101 = vadd.xlane.f32.xlu0 %v1074
    %v1102 = vpop.xlane.xlu0 %1101
    %1103 = vadd.xlane.f32.xlu0 %v1075
    %v1104 = vpop.xlane.xlu0 %1103
    %1105 = vadd.xlane.f32.xlu0 %v1076
    %v1106 = vpop.xlane.xlu0 %1105
    %1107 = vadd.xlane.f32.xlu0 %v1077
    %v1108 = vpop.xlane.xlu0 %1107
    %1109 = vadd.xlane.f32.xlu0 %v1078
    %v1110 = vpop.xlane.xlu0 %1109
    %v1111 = vrsqrt.pop %v506
    %v1112 = vmul.f32 %v1111, %v506
    %v1113 = vmul.f32 %v1112, %v1111
    %v1114 = vmul.f32 0.5, %v1113
    %v1115 = vsub.f32 1.5, %v1114
    %v1116 = vmul.f32 %v1111, %v1115
    %vm1117 = vweird.f32 %v506
    %vm1118 = vweird.f32 %v1111
    %vm1119 = vmor %vm1117, %vm1118
    %v1120 = vsel %vm1119, %v1111, %v1116
    %v1121 = vrsqrt.pop %v507
    %v1122 = vmul.f32 %v1121, %v507
    %v1123 = vmul.f32 %v1122, %v1121
    %v1124 = vmul.f32 0.5, %v1123
    %v1125 = vsub.f32 1.5, %v1124
    %v1126 = vmul.f32 %v1121, %v1125
    %vm1127 = vweird.f32 %v507
    %vm1128 = vweird.f32 %v1121
    %vm1129 = vmor %vm1127, %vm1128
    %v1130 = vsel %vm1129, %v1121, %v1126
    %v1131 = vrsqrt.pop %v508
    %v1132 = vmul.f32 %v1131, %v508
    %v1133 = vmul.f32 %v1132, %v1131
    %v1134 = vmul.f32 0.5, %v1133
    %v1135 = vsub.f32 1.5, %v1134
    %v1136 = vmul.f32 %v1131, %v1135
    %vm1137 = vweird.f32 %v508
    %vm1138 = vweird.f32 %v1131
    %vm1139 = vmor %vm1137, %vm1138
    %v1140 = vsel %vm1139, %v1131, %v1136
    %v1141 = vrsqrt.pop %v509
    %v1142 = vmul.f32 %v1141, %v509
    %v1143 = vmul.f32 %v1142, %v1141
    %v1144 = vmul.f32 0.5, %v1143
    %v1145 = vsub.f32 1.5, %v1144
    %v1146 = vmul.f32 %v1141, %v1145
    %vm1147 = vweird.f32 %v509
    %vm1148 = vweird.f32 %v1141
    %vm1149 = vmor %vm1147, %vm1148
    %v1150 = vsel %vm1149, %v1141, %v1146
    %v1155 = vperm.slane %v1120, 0
    %v1156 = vperm.slane %v1130, 0
    %v1157 = vperm.slane %v1140, 0
    %v1158 = vperm.slane %v1150, 0
    %v1163 = vmul.f32 %v1080, %v1155
    %v1164 = vmul.f32 %v1082, %v1155
    %v1165 = vmul.f32 %v1084, %v1155
    %v1166 = vmul.f32 %v1086, %v1155
    %v1167 = vmul.f32 %v1088, %v1156
    %v1168 = vmul.f32 %v1090, %v1156
    %v1169 = vmul.f32 %v1092, %v1156
    %v1170 = vmul.f32 %v1094, %v1156
    %v1171 = vmul.f32 %v1096, %v1157
    %v1172 = vmul.f32 %v1098, %v1157
    %v1173 = vmul.f32 %v1100, %v1157
    %v1174 = vmul.f32 %v1102, %v1157
    %v1175 = vmul.f32 %v1104, %v1158
    %v1176 = vmul.f32 %v1106, %v1158
    %v1177 = vmul.f32 %v1108, %v1158
    %v1178 = vmul.f32 %v1110, %v1158
    %v1179 = vsel %vm57, %v1163, -1e+30
    %v1180 = vsel %vm58, %v1164, -1e+30
    %v1181 = vsel %vm59, %v1165, -1e+30
    %v1182 = vsel %vm60, %v1166, -1e+30
    %v1183 = vsel %vm61, %v1167, -1e+30
    %v1184 = vsel %vm62, %v1168, -1e+30
    %v1185 = vsel %vm63, %v1169, -1e+30
    %v1186 = vsel %vm64, %v1170, -1e+30
    %v1187 = vsel %vm65, %v1171, -1e+30
    %v1188 = vsel %vm66, %v1172, -1e+30
    %v1189 = vsel %vm67, %v1173, -1e+30
    %v1190 = vsel %vm68, %v1174, -1e+30
    %v1191 = vsel %vm69, %v1175, -1e+30
    %v1192 = vsel %vm70, %v1176, -1e+30
    %v1193 = vsel %vm71, %v1177, -1e+30
    %v1194 = vsel %vm72, %v1178, -1e+30
    %v1195 = vsel %vm706, %v1179, -inf
    %v1196 = vsel %vm706, %v1180, -inf
    %v1197 = vmax.f32 %v1195, %v1196
    %v1198 = vsel %vm706, %v1181, -inf
    %v1199 = vmax.f32 %v1197, %v1198
    %v1200 = vsel %vm706, %v1182, -inf
    %v1201 = vmax.f32 %v1199, %v1200
    %v1202 = vrot.slane %v1201, 4
    %v1203 = vmax.f32 %v1201, %v1202
    %v1204 = vrot.slane %v1203, 2
    %v1205 = vmax.f32 %v1203, %v1204
    %v1206 = vrot.slane %v1205, 1
    %v1207 = vmax.f32 %v1205, %v1206
    %v1208 = vsel %vm706, %v1183, -inf
    %v1209 = vsel %vm706, %v1184, -inf
    %v1210 = vmax.f32 %v1208, %v1209
    %v1211 = vsel %vm706, %v1185, -inf
    %v1212 = vmax.f32 %v1210, %v1211
    %v1213 = vsel %vm706, %v1186, -inf
    %v1214 = vmax.f32 %v1212, %v1213
    %v1215 = vrot.slane %v1214, 4
    %v1216 = vmax.f32 %v1214, %v1215
    %v1217 = vrot.slane %v1216, 2
    %v1218 = vmax.f32 %v1216, %v1217
    %v1219 = vrot.slane %v1218, 1
    %v1220 = vmax.f32 %v1218, %v1219
    %v1221 = vsel %vm706, %v1187, -inf
    %v1222 = vsel %vm706, %v1188, -inf
    %v1223 = vmax.f32 %v1221, %v1222
    %v1224 = vsel %vm706, %v1189, -inf
    %v1225 = vmax.f32 %v1223, %v1224
    %v1226 = vsel %vm706, %v1190, -inf
    %v1227 = vmax.f32 %v1225, %v1226
    %v1228 = vrot.slane %v1227, 4
    %v1229 = vmax.f32 %v1227, %v1228
    %v1230 = vrot.slane %v1229, 2
    %v1231 = vmax.f32 %v1229, %v1230
    %v1232 = vrot.slane %v1231, 1
    %v1233 = vmax.f32 %v1231, %v1232
    %v1234 = vsel %vm706, %v1191, -inf
    %v1235 = vsel %vm706, %v1192, -inf
    %v1236 = vmax.f32 %v1234, %v1235
    %v1237 = vsel %vm706, %v1193, -inf
    %v1238 = vmax.f32 %v1236, %v1237
    %v1239 = vsel %vm706, %v1194, -inf
    %v1240 = vmax.f32 %v1238, %v1239
    %v1241 = vrot.slane %v1240, 4
    %v1242 = vmax.f32 %v1240, %v1241
    %v1243 = vrot.slane %v1242, 2
    %v1244 = vmax.f32 %v1242, %v1243
    %v1245 = vrot.slane %v1244, 1
    %v1246 = vmax.f32 %v1244, %v1245
    %v1247 = vsub.f32 %v1179, %v1207
    %v1248 = vsub.f32 %v1180, %v1207
    %v1249 = vsub.f32 %v1181, %v1207
    %v1250 = vsub.f32 %v1182, %v1207
    %v1251 = vsub.f32 %v1183, %v1220
    %v1252 = vsub.f32 %v1184, %v1220
    %v1253 = vsub.f32 %v1185, %v1220
    %v1254 = vsub.f32 %v1186, %v1220
    %v1255 = vsub.f32 %v1187, %v1233
    %v1256 = vsub.f32 %v1188, %v1233
    %v1257 = vsub.f32 %v1189, %v1233
    %v1258 = vsub.f32 %v1190, %v1233
    %v1259 = vsub.f32 %v1191, %v1246
    %v1260 = vsub.f32 %v1192, %v1246
    %v1261 = vsub.f32 %v1193, %v1246
    %v1262 = vsub.f32 %v1194, %v1246
    %v1263 = vmul.f32 %v1247, 1.442695
    %v1264 = vpow.pop %v1263
    %v1265 = vmul.f32 %v1248, 1.442695
    %v1266 = vpow.pop %v1265
    %v1267 = vmul.f32 %v1249, 1.442695
    %v1268 = vpow.pop %v1267
    %v1269 = vmul.f32 %v1250, 1.442695
    %v1270 = vpow.pop %v1269
    %v1271 = vmul.f32 %v1251, 1.442695
    %v1272 = vpow.pop %v1271
    %v1273 = vmul.f32 %v1252, 1.442695
    %v1274 = vpow.pop %v1273
    %v1275 = vmul.f32 %v1253, 1.442695
    %v1276 = vpow.pop %v1275
    %v1277 = vmul.f32 %v1254, 1.442695
    %v1278 = vpow.pop %v1277
    %v1279 = vmul.f32 %v1255, 1.442695
    %v1280 = vpow.pop %v1279
    %v1281 = vmul.f32 %v1256, 1.442695
    %v1282 = vpow.pop %v1281
    %v1283 = vmul.f32 %v1257, 1.442695
    %v1284 = vpow.pop %v1283
    %v1285 = vmul.f32 %v1258, 1.442695
    %v1286 = vpow.pop %v1285
    %v1287 = vmul.f32 %v1259, 1.442695
    %v1288 = vpow.pop %v1287
    %v1289 = vmul.f32 %v1260, 1.442695
    %v1290 = vpow.pop %v1289
    %v1291 = vmul.f32 %v1261, 1.442695
    %v1292 = vpow.pop %v1291
    %v1293 = vmul.f32 %v1262, 1.442695
    %v1294 = vpow.pop %v1293
    %v1295 = vsel %vm706, %v1264, 0.0
    %v1296 = vsel %vm706, %v1266, 0.0
    %v1297 = vadd.f32 %v1295, %v1296
    %v1298 = vsel %vm706, %v1268, 0.0
    %v1299 = vadd.f32 %v1297, %v1298
    %v1300 = vsel %vm706, %v1270, 0.0
    %v1301 = vadd.f32 %v1299, %v1300
    %v1302 = vrot.slane %v1301, 4
    %v1303 = vadd.f32 %v1301, %v1302
    %v1304 = vrot.slane %v1303, 2
    %v1305 = vadd.f32 %v1303, %v1304
    %v1306 = vrot.slane %v1305, 1
    %v1307 = vadd.f32 %v1305, %v1306
    %v1308 = vsel %vm706, %v1272, 0.0
    %v1309 = vsel %vm706, %v1274, 0.0
    %v1310 = vadd.f32 %v1308, %v1309
    %v1311 = vsel %vm706, %v1276, 0.0
    %v1312 = vadd.f32 %v1310, %v1311
    %v1313 = vsel %vm706, %v1278, 0.0
    %v1314 = vadd.f32 %v1312, %v1313
    %v1315 = vrot.slane %v1314, 4
    %v1316 = vadd.f32 %v1314, %v1315
    %v1317 = vrot.slane %v1316, 2
    %v1318 = vadd.f32 %v1316, %v1317
    %v1319 = vrot.slane %v1318, 1
    %v1320 = vadd.f32 %v1318, %v1319
    %v1321 = vsel %vm706, %v1280, 0.0
    %v1322 = vsel %vm706, %v1282, 0.0
    %v1323 = vadd.f32 %v1321, %v1322
    %v1324 = vsel %vm706, %v1284, 0.0
    %v1325 = vadd.f32 %v1323, %v1324
    %v1326 = vsel %vm706, %v1286, 0.0
    %v1327 = vadd.f32 %v1325, %v1326
    %v1328 = vrot.slane %v1327, 4
    %v1329 = vadd.f32 %v1327, %v1328
    %v1330 = vrot.slane %v1329, 2
    %v1331 = vadd.f32 %v1329, %v1330
    %v1332 = vrot.slane %v1331, 1
    %v1333 = vadd.f32 %v1331, %v1332
    %v1334 = vsel %vm706, %v1288, 0.0
    %v1335 = vsel %vm706, %v1290, 0.0
    %v1336 = vadd.f32 %v1334, %v1335
    %v1337 = vsel %vm706, %v1292, 0.0
    %v1338 = vadd.f32 %v1336, %v1337
    %v1339 = vsel %vm706, %v1294, 0.0
    %v1340 = vadd.f32 %v1338, %v1339
    %v1341 = vrot.slane %v1340, 4
    %v1342 = vadd.f32 %v1340, %v1341
    %v1343 = vrot.slane %v1342, 2
    %v1344 = vadd.f32 %v1342, %v1343
    %v1345 = vrot.slane %v1344, 1
    %v1346 = vadd.f32 %v1344, %v1345
    %v1347 = vrcp.pop %v1307
    %v1348 = vmul.f32 %v1307, %v1347
    %v1349 = vsub.f32 1.0, %v1348
    %v1350 = vmul.f32 %v1347, %v1349
    %v1351 = vadd.f32 %v1347, %v1350
    %vm1352 = vweird.f32 %v1307
    %vm1353 = vweird.f32 %v1347
    %vm1354 = vmor %vm1352, %vm1353
    %v1355 = vsel %vm1354, %v1347, %v1351
    %v1356 = vand.u32 2147483647, %v1307
    %vm1357 = vcmp.eq.f32.partialorder %v1356, 8.507059e+37
    %v1358 = vand.u32 %v1307, 2147483648
    %v1359 = vor.u32 1.1754944e-38, %v1358
    %v1360 = vsel %vm1357, %v1359, %v1355
    %v1361 = vrcp.pop %v1320
    %v1362 = vmul.f32 %v1320, %v1361
    %v1363 = vsub.f32 1.0, %v1362
    %v1364 = vmul.f32 %v1361, %v1363
    %v1365 = vadd.f32 %v1361, %v1364
    %vm1366 = vweird.f32 %v1320
    %vm1367 = vweird.f32 %v1361
    %vm1368 = vmor %vm1366, %vm1367
    %v1369 = vsel %vm1368, %v1361, %v1365
    %v1370 = vand.u32 2147483647, %v1320
    %vm1371 = vcmp.eq.f32.partialorder %v1370, 8.507059e+37
    %v1372 = vand.u32 %v1320, 2147483648
    %v1373 = vor.u32 1.1754944e-38, %v1372
    %v1374 = vsel %vm1371, %v1373, %v1369
    %v1375 = vrcp.pop %v1333
    %v1376 = vmul.f32 %v1333, %v1375
    %v1377 = vsub.f32 1.0, %v1376
    %v1378 = vmul.f32 %v1375, %v1377
    %v1379 = vadd.f32 %v1375, %v1378
    %vm1380 = vweird.f32 %v1333
    %vm1381 = vweird.f32 %v1375
    %vm1382 = vmor %vm1380, %vm1381
    %v1383 = vsel %vm1382, %v1375, %v1379
    %v1384 = vand.u32 2147483647, %v1333
    %vm1385 = vcmp.eq.f32.partialorder %v1384, 8.507059e+37
    %v1386 = vand.u32 %v1333, 2147483648
    %v1387 = vor.u32 1.1754944e-38, %v1386
    %v1388 = vsel %vm1385, %v1387, %v1383
    %v1389 = vrcp.pop %v1346
    %v1390 = vmul.f32 %v1346, %v1389
    %v1391 = vsub.f32 1.0, %v1390
    %v1392 = vmul.f32 %v1389, %v1391
    %v1393 = vadd.f32 %v1389, %v1392
    %vm1394 = vweird.f32 %v1346
    %vm1395 = vweird.f32 %v1389
    %vm1396 = vmor %vm1394, %vm1395
    %v1397 = vsel %vm1396, %v1389, %v1393
    %v1398 = vand.u32 2147483647, %v1346
    %vm1399 = vcmp.eq.f32.partialorder %v1398, 8.507059e+37
    %v1400 = vand.u32 %v1346, 2147483648
    %v1401 = vor.u32 1.1754944e-38, %v1400
    %v1402 = vsel %vm1399, %v1401, %v1397
    %v1403 = vmul.f32 %v1264, %v1360
    %v1404 = vmul.f32 %v1266, %v1360
    %v1405 = vmul.f32 %v1268, %v1360
    %v1406 = vmul.f32 %v1270, %v1360
    %v1407 = vmul.f32 %v1272, %v1374
    %v1408 = vmul.f32 %v1274, %v1374
    %v1409 = vmul.f32 %v1276, %v1374
    %v1410 = vmul.f32 %v1278, %v1374
    %v1411 = vmul.f32 %v1280, %v1388
    %v1412 = vmul.f32 %v1282, %v1388
    %v1413 = vmul.f32 %v1284, %v1388
    %v1414 = vmul.f32 %v1286, %v1388
    %v1415 = vmul.f32 %v1288, %v1402
    %v1416 = vmul.f32 %v1290, %v1402
    %v1417 = vmul.f32 %v1292, %v1402
    %v1418 = vmul.f32 %v1294, %v1402
    %1420 = vset.pattern.permute.xlu0 0
    %1421 = vperm.xlu0 %1420, %v1403
    %v1422 = vpop.permute.xlu0 %1421
    %1425 = vset.pattern.permute.xlu0 0
    %1426 = vperm.xlu0 %1425, %v1404
    %v1427 = vpop.permute.xlu0 %1426
    %1430 = vset.pattern.permute.xlu0 0
    %1431 = vperm.xlu0 %1430, %v1405
    %v1432 = vpop.permute.xlu0 %1431
    %1435 = vset.pattern.permute.xlu0 0
    %1436 = vperm.xlu0 %1435, %v1406
    %v1437 = vpop.permute.xlu0 %1436
    %1440 = vset.pattern.permute.xlu0 0
    %1441 = vperm.xlu0 %1440, %v1407
    %v1442 = vpop.permute.xlu0 %1441
    %1445 = vset.pattern.permute.xlu0 0
    %1446 = vperm.xlu0 %1445, %v1408
    %v1447 = vpop.permute.xlu0 %1446
    %1450 = vset.pattern.permute.xlu0 0
    %1451 = vperm.xlu0 %1450, %v1409
    %v1452 = vpop.permute.xlu0 %1451
    %1455 = vset.pattern.permute.xlu0 0
    %1456 = vperm.xlu0 %1455, %v1410
    %v1457 = vpop.permute.xlu0 %1456
    %1460 = vset.pattern.permute.xlu0 0
    %1461 = vperm.xlu0 %1460, %v1411
    %v1462 = vpop.permute.xlu0 %1461
    %1465 = vset.pattern.permute.xlu0 0
    %1466 = vperm.xlu0 %1465, %v1412
    %v1467 = vpop.permute.xlu0 %1466
    %1470 = vset.pattern.permute.xlu0 0
    %1471 = vperm.xlu0 %1470, %v1413
    %v1472 = vpop.permute.xlu0 %1471
    %1475 = vset.pattern.permute.xlu0 0
    %1476 = vperm.xlu0 %1475, %v1414
    %v1477 = vpop.permute.xlu0 %1476
    %1480 = vset.pattern.permute.xlu0 0
    %1481 = vperm.xlu0 %1480, %v1415
    %v1482 = vpop.permute.xlu0 %1481
    %1485 = vset.pattern.permute.xlu0 0
    %1486 = vperm.xlu0 %1485, %v1416
    %v1487 = vpop.permute.xlu0 %1486
    %1490 = vset.pattern.permute.xlu0 0
    %1491 = vperm.xlu0 %1490, %v1417
    %v1492 = vpop.permute.xlu0 %1491
    %1495 = vset.pattern.permute.xlu0 0
    %1496 = vperm.xlu0 %1495, %v1418
    %v1497 = vpop.permute.xlu0 %1496
    %v1499 = vmul.f32 %v1422, %v28
    %v1500 = vmul.f32 %v1427, %v29
    %v1501 = vmul.f32 %v1432, %v30
    %v1502 = vmul.f32 %v1437, %v31
    %v1503 = vmul.f32 %v1442, %v32
    %v1504 = vmul.f32 %v1447, %v33
    %v1505 = vmul.f32 %v1452, %v34
    %v1506 = vmul.f32 %v1457, %v35
    %v1507 = vmul.f32 %v1462, %v36
    %v1508 = vmul.f32 %v1467, %v37
    %v1509 = vmul.f32 %v1472, %v38
    %v1510 = vmul.f32 %v1477, %v39
    %v1511 = vmul.f32 %v1482, %v40
    %v1512 = vmul.f32 %v1487, %v41
    %v1513 = vmul.f32 %v1492, %v42
    %v1514 = vmul.f32 %v1497, %v43
    %v1515 = vadd.f32 %v1499, %v1500
    %v1516 = vadd.f32 %v1515, %v1501
    %v1517 = vadd.f32 %v1516, %v1502
    %v1518 = vrot.slane %v1517, 4
    %v1519 = vadd.f32 %v1517, %v1518
    %v1520 = vrot.slane %v1519, 2
    %v1521 = vadd.f32 %v1519, %v1520
    %v1522 = vrot.slane %v1521, 1
    %v1523 = vadd.f32 %v1521, %v1522
    %v1524 = vadd.f32 %v1503, %v1504
    %v1525 = vadd.f32 %v1524, %v1505
    %v1526 = vadd.f32 %v1525, %v1506
    %v1527 = vrot.slane %v1526, 4
    %v1528 = vadd.f32 %v1526, %v1527
    %v1529 = vrot.slane %v1528, 2
    %v1530 = vadd.f32 %v1528, %v1529
    %v1531 = vrot.slane %v1530, 1
    %v1532 = vadd.f32 %v1530, %v1531
    %v1533 = vadd.f32 %v1507, %v1508
    %v1534 = vadd.f32 %v1533, %v1509
    %v1535 = vadd.f32 %v1534, %v1510
    %v1536 = vrot.slane %v1535, 4
    %v1537 = vadd.f32 %v1535, %v1536
    %v1538 = vrot.slane %v1537, 2
    %v1539 = vadd.f32 %v1537, %v1538
    %v1540 = vrot.slane %v1539, 1
    %v1541 = vadd.f32 %v1539, %v1540
    %v1542 = vadd.f32 %v1511, %v1512
    %v1543 = vadd.f32 %v1542, %v1513
    %v1544 = vadd.f32 %v1543, %v1514
    %v1545 = vrot.slane %v1544, 4
    %v1546 = vadd.f32 %v1544, %v1545
    %v1547 = vrot.slane %v1546, 2
    %v1548 = vadd.f32 %v1546, %v1547
    %v1549 = vrot.slane %v1548, 1
    %v1550 = vadd.f32 %v1548, %v1549
    %1551 = vst [vmem:[#allocation5] sm:$0x1] %v1523
    %1552 = vst [vmem:[#allocation5 + $0x1] sm:$0x1] %v1532
    %1553 = vst [vmem:[#allocation5 + $0x2] sm:$0x1] %v1541
    %1554 = vst [vmem:[#allocation5 + $0x3] sm:$0x1] %v1550
    // Predicated region
    $region14: #{tpu_custom_call.1} parent=1 // pred_check
      _
    $region15: #{tpu_custom_call.1} parent=1 // pred_check_branch
      %1556 = sbr.rel (0) target = $region17
    $region16: #{tpu_custom_call.1} parent=1 // pred_region
      %1558 = vsyncadd [#allocation4], 0
      %s1559 = sshll.u32 [#allocation5], 4
      %s1560 = int_to_ptr.vmem [resolvable:$true] %s1559
      %s1561 = sshll.u32 %s2, 4
      %s1562 = int_to_ptr.hbm [resolvable:$true] %s1561
      %1567 = dma.vmem_to_hbm [thread:$0]  %s1560, 64, %s1562, [#allocation4], 16, 16, 1
    $region17: #{tpu_custom_call.1} parent=1 // pred_fallthru
      _
    // Predicated region
    $region18: #{tpu_custom_call.1} parent=1 // pred_check
      _
    $region19: #{tpu_custom_call.1} parent=1 // pred_check_branch
      %1569 = sbr.rel (0) target = $region21
    $region20: #{tpu_custom_call.1} parent=1 // pred_region
      %1571 = dma.done [#allocation4], 64
    $region21: #{tpu_custom_call.1} parent=1 // pred_fallthru
      _
    %1572 = vsyncpa [#allocation3], 1
    %1573 = vsyncpa [#allocation4], 1

</llo_original>
